<compile_context>
chip_gen: v5e
topology: v5e:2x2
jax: 0.10.0
libtpu: 0.0.40
codegen_flags: <defaults>
</compile_context>

<pallas_src>
import numpy as np
import jax
import jax.numpy as jnp
from jax.experimental import pallas as pl
from jax.experimental.pallas import tpu as pltpu


# ----------------------------------------------------------------------------- utils
def _round_up(x, m):
    return (x + m - 1) // m * m


def _next_pow2(x):
    x = max(int(x), 1)
    return 1 << (x - 1).bit_length()


# ----------------------------------------------------------------------------- fused layer kernel
def _fused_layer_kernel(off_ref, cnt_ref, hs_ref, hr_ref, qr_ref, obj_ref, pm_ref,
                        ws_ref, wr_ref, wal_ref, bal_ref, wh_ref, wg_ref, bg_ref,
                        h_out_ref, acc_ref):
    """Per-edge attention + gated message, scatter-sum into the node-tile accumulator via a
    one-hot matmul, then (on the last edge tile) W_h + ReLU and the fused single-step GRU."""
    i = pl.program_id(0)
    e = pl.program_id(1)

    @pl.when(e == 0)
    def _():
        acc_ref[...] = jnp.zeros_like(acc_ref)

    # Edges are pre-binned per node tile (host-side sort by obj); skip the padding edge tiles
    # of node tiles that own fewer than `max_tiles` edge tiles.
    @pl.when(e < cnt_ref[i])
    def _():
        hs = hs_ref[...]                                    # (TE, D) bf16
        hr = hr_ref[...]                                    # (TE, D) bf16

        # relu(Ws hs + Wr hr + (Wqr rela[q_rel] + bqr)[r_idx]); Ws/Wr are bias-free per spec.
        att = jnp.dot(hs, ws_ref[...], preferred_element_type=jnp.float32)
        att = att + jnp.dot(hr, wr_ref[...], preferred_element_type=jnp.float32)
        att = jnp.maximum(att + qr_ref[...].astype(jnp.float32), 0.0)

        # alpha = sigmoid(att @ w_alpha + b): VPU multiply + lane reduction (no (A,1) matmul).
        alpha = jax.nn.sigmoid(
            jnp.sum(att * wal_ref[...], axis=-1, keepdims=True) + bal_ref[...])   # (TE, 1)

        # MESS_FUNC 'hs + hr', gated.  bf16 per-edge message, f32 accumulation on the MXU.
        msg = (alpha * (hs.astype(jnp.float32) + hr.astype(jnp.float32))).astype(jnp.bfloat16)

        # scatter(message, index=obj, reduce='sum') restricted to this (node tile, edge tile):
        # (TN,1) iota vs (1,TE) shifted obj row -> (TN,TE) one-hot -> MXU matmul into the
        # persistent f32 accumulator.  Padded edges carry obj = -1 and never match.
        TN = acc_ref.shape[0]
        rows = jax.lax.broadcasted_iota(jnp.int32, (TN, 1), 0)
        obj_local = obj_ref[...] - i * TN                   # (1, TE) op, not (TN, TE)
        onehot = (rows == obj_local).astype(jnp.float32).astype(jnp.bfloat16)
        acc_ref[...] += jnp.dot(onehot, msg, preferred_element_type=jnp.float32)

    @pl.when(e == pl.num_programs(1) - 1)
    def _():
        # W_h projection + ReLU (act == 'relu').
        hidden = jnp.maximum(
            jnp.dot(acc_ref[...].astype(jnp.bfloat16), wh_ref[...],
                    preferred_element_type=jnp.float32), 0.0)    # (TN, D)
        # nn.Dropout in eval mode -> identity.  TODO(synk): train-mode dropout RNG not implemented.

        # Fused single-step nn.GRU (seq_len == 1), PyTorch gate order [r, z, n].
        h_prev = pm_ref[...]
        hid_b = hidden.astype(jnp.bfloat16)
        hpr_b = h_prev.astype(jnp.bfloat16)

        def gate(x_b, k):                                   # x @ W_k + b_k (per-gate (D,D))
            return jnp.dot(x_b, wg_ref[k], preferred_element_type=jnp.float32) + bg_ref[k]

        r = jax.nn.sigmoid(gate(hid_b, 0) + gate(hpr_b, 3))
        z = jax.nn.sigmoid(gate(hid_b, 1) + gate(hpr_b, 4))
        ng = jnp.tanh(gate(hid_b, 2) + r * gate(hpr_b, 5))
        h_out_ref[...] = (1.0 - z) * ng + z * h_prev        # output == new hidden (seq_len 1)


# ----------------------------------------------------------------------------- tiling / binning
def _choose_node_tiling(n_nodes, tn_max):
    """Pow2-bucketed node padding; always >= 2 node tiles so both v7x TensorCores get work."""
    n_bucket = _next_pow2(max(int(n_nodes), 16))
    if n_bucket <= 2 * tn_max:
        TN = max(n_bucket // 2, 8)
    else:
        TN = tn_max
    n_tiles = (n_bucket + TN - 1) // TN
    return TN, n_tiles, n_tiles * TN


def _bin_edges_by_node_tile(obj, n_node_tiles, TN, te_max):
    """Sort edges by destination node, lay them out as per-node-tile, TE-aligned segments.

    Returns (src_idx, obj_pad, tile_off, tile_cnt, TE, max_tiles, e_tiles_total) where
    src_idx gathers original edge rows into the padded layout, obj_pad is -1 on padding.
    """
    E = obj.shape[0]
    order = np.argsort(obj, kind='stable')
    obj_sorted = obj[order]
    tile_id = obj_sorted // TN
    seg_counts = np.bincount(tile_id, minlength=n_node_tiles).astype(np.int64)

    # edge tile size: >=128 lanes, pow2-bucketed so recompiles are rare
    TE = min(te_max, _next_pow2(_round_up(max(int(seg_counts.max()), 1), 128)))

    seg_tiles = (seg_counts + TE - 1) // TE                       # tiles per node tile (may be 0)
    tile_off = np.concatenate([[0], np.cumsum(seg_tiles)])[:-1].astype(np.int64)
    max_tiles = _next_pow2(max(int(seg_tiles.max()), 1))
    e_tiles_total = _next_pow2(max(int(seg_tiles.sum()), 1))      # bucketed total tile count
    E_pad = e_tiles_total * TE

    seg_starts = np.concatenate([[0], np.cumsum(seg_counts)])[:-1]
    within = np.arange(E, dtype=np.int64) - seg_starts[tile_id]
    dest = tile_off[tile_id] * TE + within

    src_idx = np.zeros(E_pad, np.int64)                           # padding rows gather edge 0
    src_idx[dest] = order
    obj_pad = np.full(E_pad, -1, np.int32)
    obj_pad[dest] = obj_sorted.astype(np.int32)

    return (src_idx, obj_pad, tile_off.astype(np.int32), seg_tiles.astype(np.int32),
            int(TE), int(max_tiles), int(e_tiles_total))


# ----------------------------------------------------------------------------- wrapper
def fused_layer_forward(hs_src, hr_src, qatt_src, sub, rel, r_idx, obj,
                        prev_mes, n_nodes, plp, pgp, *, te_max=2048, tn_max=1024):
    """One GNN layer (attention + gated message + scatter-sum + W_h/ReLU) fused with the
    single-step GRU gate, as a single pallas_call over (node tiles x binned edge tiles)."""
    D = hs_src.shape[1]
    A = qatt_src.shape[1]

    TN, n_node_tiles, N_pad = _choose_node_tiling(n_nodes, tn_max)
    (src_idx, obj_pad_np, tile_off_np, tile_cnt_np,
     TE, max_tiles, e_tiles_total) = _bin_edges_by_node_tile(
        np.asarray(obj, dtype=np.int64), n_node_tiles, TN, te_max)

    # Reordered / padded edge streams.  Gather indices are composed on the host so each
    # stream is built with a single XLA gather; padded rows never contribute (obj = -1).
    sub_p = np.asarray(sub, dtype=np.int64)[src_idx]
    rel_p = np.asarray(rel, dtype=np.int64)[src_idx]
    ridx_p = np.asarray(r_idx, dtype=np.int64)[src_idx]
    hs_pad = hs_src[jnp.asarray(sub_p)].astype(jnp.bfloat16)          # (E_pad, D)
    hr_pad = hr_src[jnp.asarray(rel_p)].astype(jnp.bfloat16)          # (E_pad, D)
    qr_pad = qatt_src[jnp.asarray(ridx_p)].astype(jnp.bfloat16)       # (E_pad, A) bf16 stream
    obj_pad = jnp.asarray(obj_pad_np).reshape(1, -1)                  # (1, E_pad) int32
    pm_pad = jnp.pad(prev_mes.astype(jnp.float32), ((0, N_pad - n_nodes), (0, 0)))

    tile_off = jnp.asarray(tile_off_np)                               # (n_node_tiles,) int32
    tile_cnt = jnp.asarray(tile_cnt_np)                               # (n_node_tiles,) int32

    last_tile = e_tiles_total - 1

    # index_maps receive the scalar-prefetch refs as trailing positional args.
    def edge_map(i, e, off, cnt):
        return (jnp.minimum(off[i] + e, last_tile), 0)

    def obj_map(i, e, off, cnt):
        return (0, jnp.minimum(off[i] + e, last_tile))

    def node_map(i, e, off, cnt):
        return (i, 0)

    def w2(i, e, off, cnt):
        return (0, 0)

    def w3(i, e, off, cnt):
        return (0, 0, 0)

    h_new = pl.pallas_call(
        _fused_layer_kernel,
        out_shape=jax.ShapeDtypeStruct((N_pad, D), jnp.float32),
        grid_spec=pltpu.PrefetchScalarGridSpec(
            num_scalar_prefetch=2,
            grid=(n_node_tiles, max_tiles),
            in_specs=[
                pl.BlockSpec((TE, D), edge_map),    # hs edge stream (bf16)
                pl.BlockSpec((TE, D), edge_map),    # hr edge stream (bf16)
                pl.BlockSpec((TE, A), edge_map),    # Wqr(h_qr)+bqr per edge (bf16)
                pl.BlockSpec((1, TE), obj_map),     # obj (tail index), -1 on padding
                pl.BlockSpec((TN, D), node_map),    # previous_mes node tile (GRU h_0)
                pl.BlockSpec((D, A), w2),           # Ws_attn.weight.T (bias-free per spec)
                pl.BlockSpec((D, A), w2),           # Wr_attn.weight.T (bias-free per spec)
                pl.BlockSpec((1, A), w2),           # w_alpha.weight row
                pl.BlockSpec((1, 1), w2),           # w_alpha.bias
                pl.BlockSpec((D, D), w2),           # W_h.weight.T (bias-free per spec)
                pl.BlockSpec((6, D, D), w3),        # GRU weights [ir, iz, in, hr, hz, hn]
                pl.BlockSpec((6, 1, D), w3),        # GRU biases  [ir, iz, in, hr, hz, hn]
            ],
            out_specs=pl.BlockSpec((TN, D), node_map),
            scratch_shapes=[pltpu.VMEM((TN, D), jnp.float32)],        # node-tile accumulator
        ),
        compiler_params=pltpu.CompilerParams(
            dimension_semantics=("parallel", "arbitrary"),
            vmem_limit_bytes=48 * 1024 * 1024),     # <= v7x 64 MiB ceiling; ample on v5e/v6e
    )(tile_off, tile_cnt, hs_pad, hr_pad, qr_pad, obj_pad, pm_pad,
      plp['Ws'], plp['Wr'], plp['w_alpha_row'], plp['b_alpha'], plp['Wh'],
      pgp['Wg'], pgp['bg'])

    return h_new[:n_nodes]


# ----------------------------------------------------------------------------- host-side graph glue
def get_neighbors_np(nodes, KG, n_rel):
    """numpy replica of GNNModel.get_neighbors (eval-mode filter_mask == all ones).

    nodes: (Nprev, 2) int [batch_idx, entity]; KG: (Ekg, 3) int [h, r, t]
    Returns (tail_nodes (N,2), edges (E,6), old_nodes_new_idx (Nprev,)).
    edge columns: [batch_idx, head_ent, rel, tail_ent, head_index, tail_index]
    """
    # TODO(synk): scipy csr_matrix / M_sub sparse selection and train-mode edge_match
    # filtering are host-side preprocessing; dense numpy equivalent used here.
    match = KG[:, 0][:, None] == nodes[None, :, 1]         # (Ekg, Nprev)
    eids, nids = np.nonzero(match)
    batch_ids = nodes[nids, 0]
    sampled = np.stack([batch_ids, KG[eids, 0], KG[eids, 1], KG[eids, 2]], axis=1)

    head_nodes, head_index = np.unique(sampled[:, [0, 1]], axis=0, return_inverse=True)
    tail_nodes, tail_index = np.unique(sampled[:, [0, 3]], axis=0, return_inverse=True)
    head_index = head_index.reshape(-1)
    tail_index = tail_index.reshape(-1)

    edges = np.concatenate([sampled, head_index[:, None], tail_index[:, None]], axis=1)
    selfloop = sampled[:, 2] == 2 * n_rel
    old_nodes_new_idx = np.sort(tail_index[selfloop])
    return tail_nodes, edges, old_nodes_new_idx


# ----------------------------------------------------------------------------- params
def init_params(key, n_rel, hidden_dim, attn_dim, n_layer):
    n_emb = 2 * n_rel + 1
    keys = iter(jax.random.split(key, 8 + 8 * n_layer + 16))

    def nrm(shape, scale=0.1):
        return jax.random.normal(next(keys), shape, dtype=jnp.float32) * scale

    params = {'rela_embed': nrm((n_emb, hidden_dim)), 'layers': []}
    for _ in range(n_layer):
        params['layers'].append({
            'rela_embed': nrm((n_emb, hidden_dim)),
            'Ws': nrm((hidden_dim, attn_dim)),     # Ws_attn.weight.T (bias=False)
            'Wr': nrm((hidden_dim, attn_dim)),     # Wr_attn.weight.T (bias=False)
            'Wqr': nrm((hidden_dim, attn_dim)),    # Wqr_attn.weight.T
            'bqr': nrm((1, attn_dim)),             # Wqr_attn.bias
            'w_alpha': nrm((attn_dim, 1)),         # w_alpha.weight.T
            'b_alpha': nrm((1, 1)),                # w_alpha.bias
            'Wh': nrm((hidden_dim, hidden_dim)),   # W_h.weight.T (bias=False)
        })
    gru = {}
    for name in ['wir', 'wiz', 'win', 'whr', 'whz', 'whn']:
        gru[name] = nrm((hidden_dim, hidden_dim))  # already x @ W orientation
    for name in ['bir', 'biz', 'bin', 'bhr', 'bhz', 'bhn']:
        gru[name] = nrm((1, hidden_dim))
    params['gru'] = gru
    params['W_final'] = nrm((hidden_dim, 1))       # W_final.weight.T (bias=False)
    return params


def pack_layer_params(lp):
    return {
        'Ws': lp['Ws'].astype(jnp.bfloat16),                 # (D, A)
        'Wr': lp['Wr'].astype(jnp.bfloat16),                 # (D, A)
        'w_alpha_row': lp['w_alpha'].T.astype(jnp.float32),  # (1, A)
        'b_alpha': lp['b_alpha'].astype(jnp.float32),        # (1, 1)
        'Wh': lp['Wh'].astype(jnp.bfloat16),                 # (D, D)
    }


def pack_gru_params(gp):
    wg = jnp.stack([gp['wir'], gp['wiz'], gp['win'],
                    gp['whr'], gp['whz'], gp['whn']], axis=0).astype(jnp.bfloat16)  # (6, D, D)
    bg = jnp.stack([gp['bir'], gp['biz'], gp['bin'],
                    gp['bhr'], gp['bhz'], gp['bhn']], axis=0).astype(jnp.float32)   # (6, 1, D)
    return {'Wg': wg, 'bg': bg}


# ----------------------------------------------------------------------------- model
def gnn_model_forward(params, triples, KG, n_ent, n_rel, n_layer):
    """Equivalent of GNNModel.forward(triples, subgraph, mode='eval')."""
    n = triples.shape[0]
    q_sub = np.asarray(triples[:, 0])
    q_rel = np.asarray(triples[:, 1])

    packed_layers = [pack_layer_params(lp) for lp in params['layers']]
    pgp = pack_gru_params(params['gru'])

    D = params['rela_embed'].shape[1]
    query = params['rela_embed'][jnp.asarray(q_rel)]            # (n, D)
    layer_input = jnp.zeros_like(query)
    nodes = np.stack([np.arange(n), q_sub], axis=1)             # start_nodes [batch, ent]

    # mode='eval': filter_mask == all ones.
    # TODO(synk): train-mode edge_match / index_to_mask answer-leak filtering not implemented.
    h_new = layer_input
    for i in range(n_layer):
        tail_nodes, edges, old_idx = get_neighbors_np(nodes, KG, n_rel)
        lp = params['layers'][i]
        plp = packed_layers[i]

        sub, rel, obj, r_idx = edges[:, 4], edges[:, 2], edges[:, 5], edges[:, 0]

        # h_qr has only n distinct rows: precompute Wqr_attn(rela_embed[q_rel]) per batch row,
        # the kernel streams the gathered (E, A) result in bf16.
        q_att = jnp.dot(lp['rela_embed'][jnp.asarray(q_rel)], lp['Wqr']) + lp['bqr']   # (n, A)

        n_nodes = tail_nodes.shape[0]
        previous_mes = jnp.zeros((n_nodes, D), jnp.float32).at[jnp.asarray(old_idx)].add(layer_input)

        h_new = fused_layer_forward(layer_input, lp['rela_embed'], q_att,
                                    sub, rel, r_idx, obj,
                                    previous_mes, n_nodes, plp, pgp)
        layer_input = h_new
        nodes = tail_nodes

    # W_final scoring on the final hidden only (lane-dense XLA dot instead of (TN,1) stores).
    scores = jnp.dot(h_new, params['W_final']).reshape(-1)      # (n_nodes_last,)
    scores_all = jnp.full((n, n_ent), -100000.0, jnp.float32)
    scores_all = scores_all.at[jnp.asarray(nodes[:, 0]), jnp.asarray(nodes[:, 1])].set(scores)
    return scores_all


# ----------------------------------------------------------------------------- main
if __name__ == "__main__":
    key = jax.random.PRNGKey(0)
    n_rel = 4
    n_ent = 16
    hidden_dim = 32
    attn_dim = 32
    n_layer = 2
    n_batch = 2

    k_param, k_kg, k_tri = jax.random.split(key, 3)
    params = init_params(k_param, n_rel, hidden_dim, attn_dim, n_layer)

    # synthetic KG: random edges + one self-loop per entity with rel == 2*n_rel
    n_rand_edges = 40
    k1, k2, k3 = jax.random.split(k_kg, 3)
    heads = np.asarray(jax.random.randint(k1, (n_rand_edges,), 0, n_ent))
    rels = np.asarray(jax.random.randint(k2, (n_rand_edges,), 0, 2 * n_rel))
    tails = np.asarray(jax.random.randint(k3, (n_rand_edges,), 0, n_ent))
    rand_edges = np.stack([heads, rels, tails], axis=1)
    self_loops = np.stack([np.arange(n_ent),
                           np.full(n_ent, 2 * n_rel),
                           np.arange(n_ent)], axis=1)
    KG = np.concatenate([rand_edges, self_loops], axis=0).astype(np.int64)

    # synthetic query triples (sub, rel, obj)
    t1, t2, t3 = jax.random.split(k_tri, 3)
    tri_sub = np.asarray(jax.random.randint(t1, (n_batch,), 0, n_ent))
    tri_rel = np.asarray(jax.random.randint(t2, (n_batch,), 0, n_rel))
    tri_obj = np.asarray(jax.random.randint(t3, (n_batch,), 0, n_ent))
    triples = np.stack([tri_sub, tri_rel, tri_obj], axis=1).astype(np.int64)

    scores_all = gnn_model_forward(params, triples, KG, n_ent, n_rel, n_layer)
    scores_all = jax.block_until_ready(scores_all)
    assert scores_all.shape == (n_batch, n_ent)
    assert bool(jnp.all(jnp.isfinite(scores_all)))
    print("KERNEL_OK")
</pallas_src>

<mosaic_0001>
module attributes {stable_mosaic.version = 11 : i64} {
  func.func @_fused_layer_kernel(%arg0: i32, %arg1: i32, %arg2: memref<2xi32, #tpu.memory_space<smem>>, %arg3: memref<2xi32, #tpu.memory_space<smem>>, %arg4: memref<128x32xbf16, #tpu.memory_space<vmem>>, %arg5: memref<128x32xbf16, #tpu.memory_space<vmem>>, %arg6: memref<128x32xbf16, #tpu.memory_space<vmem>>, %arg7: memref<1x128xi32, #tpu.memory_space<vmem>>, %arg8: memref<8x32xf32, #tpu.memory_space<vmem>>, %arg9: memref<32x32xbf16, #tpu.memory_space<vmem>>, %arg10: memref<32x32xbf16, #tpu.memory_space<vmem>>, %arg11: memref<1x32xf32, #tpu.memory_space<vmem>>, %arg12: memref<1x1xf32, #tpu.memory_space<vmem>>, %arg13: memref<32x32xbf16, #tpu.memory_space<vmem>>, %arg14: memref<6x32x32xbf16, #tpu.memory_space<vmem>>, %arg15: memref<6x1x32xf32, #tpu.memory_space<vmem>>, %arg16: memref<8x32xf32, #tpu.memory_space<vmem>>, %arg17: memref<8x32xf32, #tpu.memory_space<vmem>>) attributes {dimension_semantics = [#tpu.dimension_semantics<parallel>, #tpu.dimension_semantics<arbitrary>], iteration_bounds = array<i64: 2, 1>, scalar_prefetch = 2 : i64, scratch_operands = 1 : i64, tpu.core_type = #tpu.core_type<tc>, window_params = [{transform_indices = @transform_0, window_bounds = array<i64: 128, 32>}, {transform_indices = @transform_1, window_bounds = array<i64: 128, 32>}, {transform_indices = @transform_2, window_bounds = array<i64: 128, 32>}, {transform_indices = @transform_3, window_bounds = array<i64: 1, 128>}, {transform_indices = @transform_4, window_bounds = array<i64: 8, 32>}, {pipeline_mode = #tpu.pipeline_mode<synchronous>, transform_indices = @transform_5, window_bounds = array<i64: 32, 32>}, {pipeline_mode = #tpu.pipeline_mode<synchronous>, transform_indices = @transform_6, window_bounds = array<i64: 32, 32>}, {pipeline_mode = #tpu.pipeline_mode<synchronous>, transform_indices = @transform_7, window_bounds = array<i64: 1, 32>}, {pipeline_mode = #tpu.pipeline_mode<synchronous>, transform_indices = @transform_8, window_bounds = array<i64: 1, 1>}, {pipeline_mode = #tpu.pipeline_mode<synchronous>, transform_indices = @transform_9, window_bounds = array<i64: 32, 32>}, {pipeline_mode = #tpu.pipeline_mode<synchronous>, transform_indices = @transform_10, window_bounds = array<i64: 6, 32, 32>}, {pipeline_mode = #tpu.pipeline_mode<synchronous>, transform_indices = @transform_11, window_bounds = array<i64: 6, 1, 32>}, {transform_indices = @transform_12, window_bounds = array<i64: 8, 32>}]} {
    %c0_i32 = arith.constant 0 : i32
    %0 = arith.cmpi eq, %arg1, %c0_i32 : i32
    %1 = arith.extui %0 : i1 to i32
    %c0_i32_0 = arith.constant 0 : i32
    %2 = arith.cmpi ne, %1, %c0_i32_0 : i32
    scf.if %2 {
      %cst = arith.constant 0.000000e+00 : f32
      %11 = vector.broadcast %cst : f32 to vector<8x32xf32>
      %c0 = arith.constant 0 : index
      %c0_4 = arith.constant 0 : index
      %12 = vector.load %arg17[%c0, %c0_4] : memref<8x32xf32, #tpu.memory_space<vmem>>, vector<8x32xf32>
      tpu.vector_store %arg17[%c0, %c0_4], %11 {strides = array<i32>} : memref<8x32xf32, #tpu.memory_space<vmem>>, vector<8x32xf32>,
    } else {
    }
    %3 = arith.index_cast %arg0 : i32 to index
    %4 = memref.load %arg3[%3] : memref<2xi32, #tpu.memory_space<smem>>
    %5 = arith.cmpi slt, %arg1, %4 : i32
    %6 = arith.extui %5 : i1 to i32
    %c0_i32_1 = arith.constant 0 : i32
    %7 = arith.cmpi ne, %6, %c0_i32_1 : i32
    scf.if %7 {
      %c0 = arith.constant 0 : index
      %c0_4 = arith.constant 0 : index
      %11 = vector.load %arg4[%c0, %c0_4] : memref<128x32xbf16, #tpu.memory_space<vmem>>, vector<128x32xbf16>
      %c0_5 = arith.constant 0 : index
      %c0_6 = arith.constant 0 : index
      %12 = vector.load %arg5[%c0_5, %c0_6] : memref<128x32xbf16, #tpu.memory_space<vmem>>, vector<128x32xbf16>
      %c0_7 = arith.constant 0 : index
      %c0_8 = arith.constant 0 : index
      %13 = vector.load %arg9[%c0_7, %c0_8] : memref<32x32xbf16, #tpu.memory_space<vmem>>, vector<32x32xbf16>
      %cst = arith.constant dense<0.000000e+00> : vector<128x32xf32>
      %14 = tpu.matmul %11, %13, %cst {dimension_numbers = #tpu.dot_dimension_numbers<[1], [0], [0], [1], [0, 0, 1, 1], [], []>} : vector<128x32xbf16>, vector<32x32xbf16>, vector<128x32xf32> -> vector<128x32xf32>
      %c0_9 = arith.constant 0 : index
      %c0_10 = arith.constant 0 : index
      %15 = vector.load %arg10[%c0_9, %c0_10] : memref<32x32xbf16, #tpu.memory_space<vmem>>, vector<32x32xbf16>
      %cst_11 = arith.constant dense<0.000000e+00> : vector<128x32xf32>
      %16 = tpu.matmul %12, %15, %cst_11 {dimension_numbers = #tpu.dot_dimension_numbers<[1], [0], [0], [1], [0, 0, 1, 1], [], []>} : vector<128x32xbf16>, vector<32x32xbf16>, vector<128x32xf32> -> vector<128x32xf32>
      %17 = arith.addf %14, %16 : vector<128x32xf32>
      %c0_12 = arith.constant 0 : index
      %c0_13 = arith.constant 0 : index
      %18 = vector.load %arg6[%c0_12, %c0_13] : memref<128x32xbf16, #tpu.memory_space<vmem>>, vector<128x32xbf16>
      %19 = arith.extf %18 : vector<128x32xbf16> to vector<128x32xf32>
      %20 = arith.addf %17, %19 : vector<128x32xf32>
      %cst_14 = arith.constant 0.000000e+00 : f32
      %21 = vector.broadcast %cst_14 : f32 to vector<128x32xf32>
      %22 = arith.maximumf %20, %21 : vector<128x32xf32>
      %c0_15 = arith.constant 0 : index
      %c0_16 = arith.constant 0 : index
      %23 = vector.load %arg11[%c0_15, %c0_16] : memref<1x32xf32, #tpu.memory_space<vmem>>, vector<1x32xf32>
      %24 = vector.broadcast %23 : vector<1x32xf32> to vector<128x32xf32>
      %25 = arith.mulf %22, %24 : vector<128x32xf32>
      %cst_17 = arith.constant dense<0.000000e+00> : vector<128xf32>
      %26 = vector.multi_reduction <add>, %25, %cst_17 [1] : vector<128x32xf32> to vector<128xf32>
      %27 = vector.shape_cast %26 : vector<128xf32> to vector<128x1xf32>
      %c0_18 = arith.constant 0 : index
      %c0_19 = arith.constant 0 : index
      %28 = vector.load %arg12[%c0_18, %c0_19] : memref<1x1xf32, #tpu.memory_space<vmem>>, vector<1x1xf32>
      %29 = vector.broadcast %28 : vector<1x1xf32> to vector<128x1xf32>
      %30 = arith.addf %27, %29 : vector<128x1xf32>
      %31 = arith.negf %30 : vector<128x1xf32>
      %32 = math.exp %31 : vector<128x1xf32>
      %cst_20 = arith.constant 1.000000e+00 : f32
      %33 = vector.broadcast %cst_20 : f32 to vector<128x1xf32>
      %34 = arith.addf %33, %32 : vector<128x1xf32>
      %35 = arith.divf %33, %34 : vector<128x1xf32>
      %36 = arith.extf %11 : vector<128x32xbf16> to vector<128x32xf32>
      %37 = arith.extf %12 : vector<128x32xbf16> to vector<128x32xf32>
      %38 = arith.addf %36, %37 : vector<128x32xf32>
      %39 = vector.broadcast %35 : vector<128x1xf32> to vector<128x32xf32>
      %40 = arith.mulf %39, %38 : vector<128x32xf32>
      %41 = arith.truncf %40 : vector<128x32xf32> to vector<128x32xbf16>
      %42 = tpu.iota {dimensions = array<i32: 0>} : vector<8x1xi32>
      %c0_21 = arith.constant 0 : index
      %c0_22 = arith.constant 0 : index
      %43 = vector.load %arg7[%c0_21, %c0_22] : memref<1x128xi32, #tpu.memory_space<vmem>>, vector<1x128xi32>
      %c8_i32 = arith.constant 8 : i32
      %44 = arith.muli %arg0, %c8_i32 : i32
      %45 = vector.broadcast %44 : i32 to vector<1x128xi32>
      %46 = arith.subi %43, %45 : vector<1x128xi32>
      %47 = vector.broadcast %42 : vector<8x1xi32> to vector<8x128xi32>
      %48 = vector.broadcast %46 : vector<1x128xi32> to vector<8x128xi32>
      %49 = arith.cmpi eq, %47, %48 : vector<8x128xi32>
      %50 = arith.extui %49 : vector<8x128xi1> to vector<8x128xi32>
      %51 = arith.sitofp %50 : vector<8x128xi32> to vector<8x128xf32>
      %52 = arith.truncf %51 : vector<8x128xf32> to vector<8x128xbf16>
      %c0_23 = arith.constant 0 : index
      %c0_24 = arith.constant 0 : index
      %53 = vector.load %arg17[%c0_23, %c0_24] : memref<8x32xf32, #tpu.memory_space<vmem>>, vector<8x32xf32>
      %cst_25 = arith.constant dense<0.000000e+00> : vector<8x32xf32>
      %54 = tpu.matmul %52, %41, %cst_25 {dimension_numbers = #tpu.dot_dimension_numbers<[1], [0], [0], [1], [0, 0, 1, 1], [], []>} : vector<8x128xbf16>, vector<128x32xbf16>, vector<8x32xf32> -> vector<8x32xf32>
      %55 = arith.addf %53, %54 : vector<8x32xf32>
      %c0_26 = arith.constant 0 : index
      %c0_27 = arith.constant 0 : index
      %56 = vector.load %arg17[%c0_26, %c0_27] : memref<8x32xf32, #tpu.memory_space<vmem>>, vector<8x32xf32>
      tpu.vector_store %arg17[%c0_26, %c0_27], %55 {strides = array<i32>} : memref<8x32xf32, #tpu.memory_space<vmem>>, vector<8x32xf32>,
    } else {
    }
    %c0_i32_2 = arith.constant 0 : i32
    %8 = arith.cmpi eq, %arg1, %c0_i32_2 : i32
    %9 = arith.extui %8 : i1 to i32
    %c0_i32_3 = arith.constant 0 : i32
    %10 = arith.cmpi ne, %9, %c0_i32_3 : i32
    scf.if %10 {
      %c0 = arith.constant 0 : index
      %c0_4 = arith.constant 0 : index
      %11 = vector.load %arg17[%c0, %c0_4] : memref<8x32xf32, #tpu.memory_space<vmem>>, vector<8x32xf32>
      %12 = arith.truncf %11 : vector<8x32xf32> to vector<8x32xbf16>
      %c0_5 = arith.constant 0 : index
      %c0_6 = arith.constant 0 : index
      %13 = vector.load %arg13[%c0_5, %c0_6] : memref<32x32xbf16, #tpu.memory_space<vmem>>, vector<32x32xbf16>
      %cst = arith.constant dense<0.000000e+00> : vector<8x32xf32>
      %14 = tpu.matmul %12, %13, %cst {dimension_numbers = #tpu.dot_dimension_numbers<[1], [0], [0], [1], [0, 0, 1, 1], [], []>} : vector<8x32xbf16>, vector<32x32xbf16>, vector<8x32xf32> -> vector<8x32xf32>
      %cst_7 = arith.constant 0.000000e+00 : f32
      %15 = vector.broadcast %cst_7 : f32 to vector<8x32xf32>
      %16 = arith.maximumf %14, %15 : vector<8x32xf32>
      %c0_8 = arith.constant 0 : index
      %c0_9 = arith.constant 0 : index
      %17 = vector.load %arg8[%c0_8, %c0_9] : memref<8x32xf32, #tpu.memory_space<vmem>>, vector<8x32xf32>
      %18 = arith.truncf %16 : vector<8x32xf32> to vector<8x32xbf16>
      %19 = arith.truncf %17 : vector<8x32xf32> to vector<8x32xbf16>
      %c0_10 = arith.constant 0 : index
      %c0_11 = arith.constant 0 : index
      %c0_12 = arith.constant 0 : index
      %20 = vector.load %arg14[%c0_10, %c0_11, %c0_12] : memref<6x32x32xbf16, #tpu.memory_space<vmem>>, vector<1x32x32xbf16>
      %21 = vector.shape_cast %20 : vector<1x32x32xbf16> to vector<32x32xbf16>
      %cst_13 = arith.constant dense<0.000000e+00> : vector<8x32xf32>
      %22 = tpu.matmul %18, %21, %cst_13 {dimension_numbers = #tpu.dot_dimension_numbers<[1], [0], [0], [1], [0, 0, 1, 1], [], []>} : vector<8x32xbf16>, vector<32x32xbf16>, vector<8x32xf32> -> vector<8x32xf32>
      %c0_14 = arith.constant 0 : index
      %c0_15 = arith.constant 0 : index
      %c0_16 = arith.constant 0 : index
      %23 = vector.load %arg15[%c0_14, %c0_15, %c0_16] : memref<6x1x32xf32, #tpu.memory_space<vmem>>, vector<1x1x32xf32>
      %24 = vector.shape_cast %23 : vector<1x1x32xf32> to vector<1x32xf32>
      %25 = vector.broadcast %24 : vector<1x32xf32> to vector<8x32xf32>
      %26 = arith.addf %22, %25 : vector<8x32xf32>
      %c3 = arith.constant 3 : index
      %c0_17 = arith.constant 0 : index
      %c0_18 = arith.constant 0 : index
      %27 = vector.load %arg14[%c3, %c0_17, %c0_18] : memref<6x32x32xbf16, #tpu.memory_space<vmem>>, vector<1x32x32xbf16>
      %28 = vector.shape_cast %27 : vector<1x32x32xbf16> to vector<32x32xbf16>
      %cst_19 = arith.constant dense<0.000000e+00> : vector<8x32xf32>
      %29 = tpu.matmul %19, %28, %cst_19 {dimension_numbers = #tpu.dot_dimension_numbers<[1], [0], [0], [1], [0, 0, 1, 1], [], []>} : vector<8x32xbf16>, vector<32x32xbf16>, vector<8x32xf32> -> vector<8x32xf32>
      %c3_20 = arith.constant 3 : index
      %c0_21 = arith.constant 0 : index
      %c0_22 = arith.constant 0 : index
      %30 = vector.load %arg15[%c3_20, %c0_21, %c0_22] : memref<6x1x32xf32, #tpu.memory_space<vmem>>, vector<1x1x32xf32>
      %31 = vector.shape_cast %30 : vector<1x1x32xf32> to vector<1x32xf32>
      %32 = vector.broadcast %31 : vector<1x32xf32> to vector<8x32xf32>
      %33 = arith.addf %29, %32 : vector<8x32xf32>
      %34 = arith.addf %26, %33 : vector<8x32xf32>
      %35 = arith.negf %34 : vector<8x32xf32>
      %36 = math.exp %35 : vector<8x32xf32>
      %cst_23 = arith.constant 1.000000e+00 : f32
      %37 = vector.broadcast %cst_23 : f32 to vector<8x32xf32>
      %38 = arith.addf %37, %36 : vector<8x32xf32>
      %39 = arith.divf %37, %38 : vector<8x32xf32>
      %c1 = arith.constant 1 : index
      %c0_24 = arith.constant 0 : index
      %c0_25 = arith.constant 0 : index
      %40 = vector.load %arg14[%c1, %c0_24, %c0_25] : memref<6x32x32xbf16, #tpu.memory_space<vmem>>, vector<1x32x32xbf16>
      %41 = vector.shape_cast %40 : vector<1x32x32xbf16> to vector<32x32xbf16>
      %cst_26 = arith.constant dense<0.000000e+00> : vector<8x32xf32>
      %42 = tpu.matmul %18, %41, %cst_26 {dimension_numbers = #tpu.dot_dimension_numbers<[1], [0], [0], [1], [0, 0, 1, 1], [], []>} : vector<8x32xbf16>, vector<32x32xbf16>, vector<8x32xf32> -> vector<8x32xf32>
      %c1_27 = arith.constant 1 : index
      %c0_28 = arith.constant 0 : index
      %c0_29 = arith.constant 0 : index
      %43 = vector.load %arg15[%c1_27, %c0_28, %c0_29] : memref<6x1x32xf32, #tpu.memory_space<vmem>>, vector<1x1x32xf32>
      %44 = vector.shape_cast %43 : vector<1x1x32xf32> to vector<1x32xf32>
      %45 = vector.broadcast %44 : vector<1x32xf32> to vector<8x32xf32>
      %46 = arith.addf %42, %45 : vector<8x32xf32>
      %c4 = arith.constant 4 : index
      %c0_30 = arith.constant 0 : index
      %c0_31 = arith.constant 0 : index
      %47 = vector.load %arg14[%c4, %c0_30, %c0_31] : memref<6x32x32xbf16, #tpu.memory_space<vmem>>, vector<1x32x32xbf16>
      %48 = vector.shape_cast %47 : vector<1x32x32xbf16> to vector<32x32xbf16>
      %cst_32 = arith.constant dense<0.000000e+00> : vector<8x32xf32>
      %49 = tpu.matmul %19, %48, %cst_32 {dimension_numbers = #tpu.dot_dimension_numbers<[1], [0], [0], [1], [0, 0, 1, 1], [], []>} : vector<8x32xbf16>, vector<32x32xbf16>, vector<8x32xf32> -> vector<8x32xf32>
      %c4_33 = arith.constant 4 : index
      %c0_34 = arith.constant 0 : index
      %c0_35 = arith.constant 0 : index
      %50 = vector.load %arg15[%c4_33, %c0_34, %c0_35] : memref<6x1x32xf32, #tpu.memory_space<vmem>>, vector<1x1x32xf32>
      %51 = vector.shape_cast %50 : vector<1x1x32xf32> to vector<1x32xf32>
      %52 = vector.broadcast %51 : vector<1x32xf32> to vector<8x32xf32>
      %53 = arith.addf %49, %52 : vector<8x32xf32>
      %54 = arith.addf %46, %53 : vector<8x32xf32>
      %55 = arith.negf %54 : vector<8x32xf32>
      %56 = math.exp %55 : vector<8x32xf32>
      %cst_36 = arith.constant 1.000000e+00 : f32
      %57 = vector.broadcast %cst_36 : f32 to vector<8x32xf32>
      %58 = arith.addf %57, %56 : vector<8x32xf32>
      %59 = arith.divf %57, %58 : vector<8x32xf32>
      %c2 = arith.constant 2 : index
      %c0_37 = arith.constant 0 : index
      %c0_38 = arith.constant 0 : index
      %60 = vector.load %arg14[%c2, %c0_37, %c0_38] : memref<6x32x32xbf16, #tpu.memory_space<vmem>>, vector<1x32x32xbf16>
      %61 = vector.shape_cast %60 : vector<1x32x32xbf16> to vector<32x32xbf16>
      %cst_39 = arith.constant dense<0.000000e+00> : vector<8x32xf32>
      %62 = tpu.matmul %18, %61, %cst_39 {dimension_numbers = #tpu.dot_dimension_numbers<[1], [0], [0], [1], [0, 0, 1, 1], [], []>} : vector<8x32xbf16>, vector<32x32xbf16>, vector<8x32xf32> -> vector<8x32xf32>
      %c2_40 = arith.constant 2 : index
      %c0_41 = arith.constant 0 : index
      %c0_42 = arith.constant 0 : index
      %63 = vector.load %arg15[%c2_40, %c0_41, %c0_42] : memref<6x1x32xf32, #tpu.memory_space<vmem>>, vector<1x1x32xf32>
      %64 = vector.shape_cast %63 : vector<1x1x32xf32> to vector<1x32xf32>
      %65 = vector.broadcast %64 : vector<1x32xf32> to vector<8x32xf32>
      %66 = arith.addf %62, %65 : vector<8x32xf32>
      %c5 = arith.constant 5 : index
      %c0_43 = arith.constant 0 : index
      %c0_44 = arith.constant 0 : index
      %67 = vector.load %arg14[%c5, %c0_43, %c0_44] : memref<6x32x32xbf16, #tpu.memory_space<vmem>>, vector<1x32x32xbf16>
      %68 = vector.shape_cast %67 : vector<1x32x32xbf16> to vector<32x32xbf16>
      %cst_45 = arith.constant dense<0.000000e+00> : vector<8x32xf32>
      %69 = tpu.matmul %19, %68, %cst_45 {dimension_numbers = #tpu.dot_dimension_numbers<[1], [0], [0], [1], [0, 0, 1, 1], [], []>} : vector<8x32xbf16>, vector<32x32xbf16>, vector<8x32xf32> -> vector<8x32xf32>
      %c5_46 = arith.constant 5 : index
      %c0_47 = arith.constant 0 : index
      %c0_48 = arith.constant 0 : index
      %70 = vector.load %arg15[%c5_46, %c0_47, %c0_48] : memref<6x1x32xf32, #tpu.memory_space<vmem>>, vector<1x1x32xf32>
      %71 = vector.shape_cast %70 : vector<1x1x32xf32> to vector<1x32xf32>
      %72 = vector.broadcast %71 : vector<1x32xf32> to vector<8x32xf32>
      %73 = arith.addf %69, %72 : vector<8x32xf32>
      %74 = arith.mulf %39, %73 : vector<8x32xf32>
      %75 = arith.addf %66, %74 : vector<8x32xf32>
      %76 = math.tanh %75 : vector<8x32xf32>
      %cst_49 = arith.constant 1.000000e+00 : f32
      %77 = vector.broadcast %cst_49 : f32 to vector<8x32xf32>
      %78 = arith.subf %77, %59 : vector<8x32xf32>
      %79 = arith.mulf %78, %76 : vector<8x32xf32>
      %80 = arith.mulf %59, %17 : vector<8x32xf32>
      %81 = arith.addf %79, %80 : vector<8x32xf32>
      %c0_50 = arith.constant 0 : index
      %c0_51 = arith.constant 0 : index
      %82 = vector.load %arg16[%c0_50, %c0_51] : memref<8x32xf32, #tpu.memory_space<vmem>>, vector<8x32xf32>
      tpu.vector_store %arg16[%c0_50, %c0_51], %81 {strides = array<i32>} : memref<8x32xf32, #tpu.memory_space<vmem>>, vector<8x32xf32>,
    } else {
    }
    return
  }
  func.func @transform_0(%arg0: i32, %arg1: i32, %arg2: memref<2xi32, #tpu.memory_space<smem>>, %arg3: memref<2xi32, #tpu.memory_space<smem>>) -> (i32, i32) {
    %0 = arith.index_cast %arg0 : i32 to index
    %1 = memref.load %arg2[%0] : memref<2xi32, #tpu.memory_space<smem>>
    %2 = arith.addi %1, %arg1 : i32
    %c0_i32 = arith.constant 0 : i32
    %3 = arith.minsi %2, %c0_i32 : i32
    %c0_i32_0 = arith.constant 0 : i32
    %c0_i32_1 = arith.constant 0 : i32
    return %3, %c0_i32_0 : i32, i32
  }
  func.func @transform_1(%arg0: i32, %arg1: i32, %arg2: memref<2xi32, #tpu.memory_space<smem>>, %arg3: memref<2xi32, #tpu.memory_space<smem>>) -> (i32, i32) {
    %0 = arith.index_cast %arg0 : i32 to index
    %1 = memref.load %arg2[%0] : memref<2xi32, #tpu.memory_space<smem>>
    %2 = arith.addi %1, %arg1 : i32
    %c0_i32 = arith.constant 0 : i32
    %3 = arith.minsi %2, %c0_i32 : i32
    %c0_i32_0 = arith.constant 0 : i32
    %c0_i32_1 = arith.constant 0 : i32
    return %3, %c0_i32_0 : i32, i32
  }
  func.func @transform_2(%arg0: i32, %arg1: i32, %arg2: memref<2xi32, #tpu.memory_space<smem>>, %arg3: memref<2xi32, #tpu.memory_space<smem>>) -> (i32, i32) {
    %0 = arith.index_cast %arg0 : i32 to index
    %1 = memref.load %arg2[%0] : memref<2xi32, #tpu.memory_space<smem>>
    %2 = arith.addi %1, %arg1 : i32
    %c0_i32 = arith.constant 0 : i32
    %3 = arith.minsi %2, %c0_i32 : i32
    %c0_i32_0 = arith.constant 0 : i32
    %c0_i32_1 = arith.constant 0 : i32
    return %3, %c0_i32_0 : i32, i32
  }
  func.func @transform_3(%arg0: i32, %arg1: i32, %arg2: memref<2xi32, #tpu.memory_space<smem>>, %arg3: memref<2xi32, #tpu.memory_space<smem>>) -> (i32, i32) {
    %0 = arith.index_cast %arg0 : i32 to index
    %1 = memref.load %arg2[%0] : memref<2xi32, #tpu.memory_space<smem>>
    %2 = arith.addi %1, %arg1 : i32
    %c0_i32 = arith.constant 0 : i32
    %3 = arith.minsi %2, %c0_i32 : i32
    %c0_i32_0 = arith.constant 0 : i32
    %c0_i32_1 = arith.constant 0 : i32
    return %c0_i32_0, %3 : i32, i32
  }
  func.func @transform_4(%arg0: i32, %arg1: i32, %arg2: memref<2xi32, #tpu.memory_space<smem>>, %arg3: memref<2xi32, #tpu.memory_space<smem>>) -> (i32, i32) {
    %c0_i32 = arith.constant 0 : i32
    %c0_i32_0 = arith.constant 0 : i32
    return %arg0, %c0_i32 : i32, i32
  }
  func.func @transform_5(%arg0: i32, %arg1: i32, %arg2: memref<2xi32, #tpu.memory_space<smem>>, %arg3: memref<2xi32, #tpu.memory_space<smem>>) -> (i32, i32) {
    %c0_i32 = arith.constant 0 : i32
    %c0_i32_0 = arith.constant 0 : i32
    %c0_i32_1 = arith.constant 0 : i32
    return %c0_i32, %c0_i32_0 : i32, i32
  }
  func.func @transform_6(%arg0: i32, %arg1: i32, %arg2: memref<2xi32, #tpu.memory_space<smem>>, %arg3: memref<2xi32, #tpu.memory_space<smem>>) -> (i32, i32) {
    %c0_i32 = arith.constant 0 : i32
    %c0_i32_0 = arith.constant 0 : i32
    %c0_i32_1 = arith.constant 0 : i32
    return %c0_i32, %c0_i32_0 : i32, i32
  }
  func.func @transform_7(%arg0: i32, %arg1: i32, %arg2: memref<2xi32, #tpu.memory_space<smem>>, %arg3: memref<2xi32, #tpu.memory_space<smem>>) -> (i32, i32) {
    %c0_i32 = arith.constant 0 : i32
    %c0_i32_0 = arith.constant 0 : i32
    %c0_i32_1 = arith.constant 0 : i32
    return %c0_i32, %c0_i32_0 : i32, i32
  }
  func.func @transform_8(%arg0: i32, %arg1: i32, %arg2: memref<2xi32, #tpu.memory_space<smem>>, %arg3: memref<2xi32, #tpu.memory_space<smem>>) -> (i32, i32) {
    %c0_i32 = arith.constant 0 : i32
    %c0_i32_0 = arith.constant 0 : i32
    %c0_i32_1 = arith.constant 0 : i32
    return %c0_i32, %c0_i32_0 : i32, i32
  }
  func.func @transform_9(%arg0: i32, %arg1: i32, %arg2: memref<2xi32, #tpu.memory_space<smem>>, %arg3: memref<2xi32, #tpu.memory_space<smem>>) -> (i32, i32) {
    %c0_i32 = arith.constant 0 : i32
    %c0_i32_0 = arith.constant 0 : i32
    %c0_i32_1 = arith.constant 0 : i32
    return %c0_i32, %c0_i32_0 : i32, i32
  }
  func.func @transform_10(%arg0: i32, %arg1: i32, %arg2: memref<2xi32, #tpu.memory_space<smem>>, %arg3: memref<2xi32, #tpu.memory_space<smem>>) -> (i32, i32, i32) {
    %c0_i32 = arith.constant 0 : i32
    %c0_i32_0 = arith.constant 0 : i32
    %c0_i32_1 = arith.constant 0 : i32
    %c0_i32_2 = arith.constant 0 : i32
    return %c0_i32, %c0_i32_0, %c0_i32_1 : i32, i32, i32
  }
  func.func @transform_11(%arg0: i32, %arg1: i32, %arg2: memref<2xi32, #tpu.memory_space<smem>>, %arg3: memref<2xi32, #tpu.memory_space<smem>>) -> (i32, i32, i32) {
    %c0_i32 = arith.constant 0 : i32
    %c0_i32_0 = arith.constant 0 : i32
    %c0_i32_1 = arith.constant 0 : i32
    %c0_i32_2 = arith.constant 0 : i32
    return %c0_i32, %c0_i32_0, %c0_i32_1 : i32, i32, i32
  }
  func.func @transform_12(%arg0: i32, %arg1: i32, %arg2: memref<2xi32, #tpu.memory_space<smem>>, %arg3: memref<2xi32, #tpu.memory_space<smem>>) -> (i32, i32) {
    %c0_i32 = arith.constant 0 : i32
    %c0_i32_0 = arith.constant 0 : i32
    return %arg0, %c0_i32 : i32, i32
  }
}

</mosaic_0001>

<llo_original>
// kernel: tpu_custom_call.1
$region0: #{tpu_custom_call.1}
  #allocation0 [shape = 'u32[]', space=smem, size = 0x4, offset = 0x4, fixed_abs, tag = 'smem constant byte address 0x4 - core index']
  #allocation1 [shape = 'u32[72,128]{1,0:T(1,128)}', space=vmem, size = 0x9000, scoped, tag = 'internal scratch']
  #allocation2 [shape = 'f32[8,32]{1,0:T(8,128)}', space=vmem, size = 0x1000, scoped, tag = 'scratch operand']
  #allocation3 [shape = 's32[1]{0}', space=sflag, size = 0x4, scoped, tag = 'scoped memory for tpu_custom_call.1']
  #allocation4 [shape = 'u8[512]{0}', space=smem, size = 0x200, scoped, tag = 'prefetched SMEM operand 0']
  #allocation5 [shape = 'u8[512]{0}', space=smem, size = 0x200, scoped, tag = 'prefetched SMEM operand 1']
  #allocation6 [shape = 'f32[1,1]{1,0:T(1,128)S(1)}', space=vmem, size = 0x200, scoped, tag = 'scoped memory for tpu_custom_call.1']
  %s0 = inlined_call_operand.vmem [shape: s32[2], index: 0, kind: input, shape index: {}]
  %s1 = inlined_call_operand.vmem [shape: s32[2], index: 1, kind: input, shape index: {}]
  %s2 = inlined_call_operand.vmem [shape: bf16[128,32], index: 2, kind: input, shape index: {}]
  %s3 = inlined_call_operand.vmem [shape: bf16[128,32], index: 3, kind: input, shape index: {}]
  %s4 = inlined_call_operand.vmem [shape: bf16[128,32], index: 4, kind: input, shape index: {}]
  %s5 = inlined_call_operand.vmem [shape: s32[1,128], index: 5, kind: input, shape index: {}]
  %s6 = inlined_call_operand.vmem [shape: f32[16,32], index: 6, kind: input, shape index: {}]
  %s7 = inlined_call_operand.vmem [shape: bf16[32,32], index: 7, kind: input, shape index: {}]
  %s8 = inlined_call_operand.vmem [shape: bf16[32,32], index: 8, kind: input, shape index: {}]
  %s9 = inlined_call_operand.vmem [shape: f32[1,32], index: 9, kind: input, shape index: {}]
  %s10 = inlined_call_operand.<no memory space> [shape: f32[1,1], index: 10, kind: input, shape index: {}]
  %s11 = inlined_call_operand.vmem [shape: bf16[32,32], index: 11, kind: input, shape index: {}]
  %s12 = inlined_call_operand.vmem [shape: bf16[6,32,32], index: 12, kind: input, shape index: {}]
  %s13 = inlined_call_operand.vmem [shape: f32[6,1,32], index: 13, kind: input, shape index: {}]
  %s14 = inlined_call_operand.hbm [shape: f32[16,32], index: 14, kind: output, shape index: {}]
  %s15 = sld [smem:[#allocation0]]
  $region93: #{tpu_custom_call.1} parent=0
    _
  %s17 = ssub.s32 1, %s15
  %s18 = scalar_select 0, %s17, %s15
  %s20 = sshll.u32 %s0, 4
  %s21 = int_to_ptr.vmem [resolvable:$true] %s20
  %23 = dma.vmem_to_smem %s21, 16, [#allocation4], [#allocation3]
  %s25 = sshll.u32 %s1, 4
  %s26 = int_to_ptr.vmem [resolvable:$true] %s25
  %28 = dma.vmem_to_smem %s26, 16, [#allocation5], [#allocation3]
  %v29 = vstv %s10
  %30 = vst [vmem:[#allocation6] sm:$0x1] %v29
  %32 = dma.done [#allocation3], 32
  %33 = sfence
  $region1: #{tpu_custom_call.1} parent=0
    #allocation7 [shape = 'u8[8192]{0}', space=vmem, size = 0x2000, scoped, tag = 'output window, operand 0']
    #allocation8 [shape = 's32[2]{0}', space=sflag, size = 0x8, scoped, tag = 'scoped memory for tpu_custom_call.1']
    %34 = vsyncpa [#allocation8], 0
    %s35 = scalar_lea.sflag [#allocation8], 1
    %36 = vsyncpa %s35, 0
    loop: start=0, step=1, limit=4
    $region2: #{tpu_custom_call.1} parent=1 // loop_pre_header
      _
    $region3: #{tpu_custom_call.1} parent=1 // loop_header
      %s38 = sphi 0, %s42
      %p39 = scmp.ge.s32.totalorder %s38, 4
      %s45 = sphi 0, %s57
      %s46 = sphi 0, %s53
      %s47 = sphi 0, %s45
      %s48 = sphi 0, %s46
      %s49 = sphi 0, %s47
      %s50 = sphi 0, %s48
      %s68 = sphi 0, %s70
      %s71 = sphi 0, %s68
      %s72 = sphi 0, %s71
      %s88 = sphi 0, %s72
      %s102 = sphi 0, %s104
      %s105 = sphi 0, %s102
      %s106 = sphi 0, %s105
      %s122 = sphi 0, %s106
      %s136 = sphi 0, %s138
      %s139 = sphi 0, %s136
      %s140 = sphi 0, %s139
      %s156 = sphi 0, %s140
      %s170 = sphi 0, %s172
      %s173 = sphi 0, %s170
      %s174 = sphi 0, %s173
      %s190 = sphi 0, %s174
      %s196 = sphi 0, %s198
      %s199 = sphi 0, %s196
      %s200 = sphi 0, %s199
      %s216 = sphi 0, %s200
      %s220 = sphi 0, %s220
      %s222 = sphi 0, %s220
      %s223 = sphi 0, %s222
      %s237 = sphi 0, %s223
      %s241 = sphi 0, %s241
      %s243 = sphi 0, %s241
      %s244 = sphi 0, %s243
      %s258 = sphi 0, %s244
      %s262 = sphi 0, %s262
      %s264 = sphi 0, %s262
      %s265 = sphi 0, %s264
      %s279 = sphi 0, %s265
      %s283 = sphi 0, %s283
      %s285 = sphi 0, %s283
      %s286 = sphi 0, %s285
      %s300 = sphi 0, %s286
      %s304 = sphi 0, %s304
      %s306 = sphi 0, %s304
      %s307 = sphi 0, %s306
      %s321 = sphi 0, %s307
      %s325 = sphi 0, %s325
      %s327 = sphi 0, %s325
      %s328 = sphi 0, %s327
      %s342 = sphi 0, %s328
      %s346 = sphi 0, %s346
      %s348 = sphi 0, %s346
      %s349 = sphi 0, %s348
      %s363 = sphi 0, %s349
      %s369 = sphi 0, %s371
      %s372 = sphi 0, %s369
      %s373 = sphi 0, %s372
      %s389 = sphi 0, %s373
    $region4: #{tpu_custom_call.1} parent=1 // loop_header_branch
      %41 = sbr.rel (%p39) target = $region8
    $region5: #{tpu_custom_call.1} parent=1 // loop_body
      %s43 = ssub.s32 %s38, 1
      %s44 = ssub.s32 %s38, 2
      %s51 = sadd.s32 1, %s46
      %p52 = scmp.ge.s32.totalorder %s51, 1
      %s53 = scalar_select %p52, 0, %s51
      %s54 = sadd.s32 1, %s45
      %s55 = scalar_select %p52, %s54, %s45
      %p56 = scmp.ge.s32.totalorder %s55, 2
      %s57 = scalar_select %p56, 0, %s55
      %s58 = sld [smem:[#allocation4 + %s45]]
      %s59 = sadd.s32 %s58, %s46
      %p60 = scmp.lt.s32.totalorder %s59, 0
      %s61 = scalar_select %p60, %s59, 0
      %s62 = sld [smem:[#allocation4 + %s57]]
      %s63 = sadd.s32 %s62, %s53
      %p64 = scmp.lt.s32.totalorder %s63, 0
      %s65 = scalar_select %p64, %s63, 0
      %s66 = ssub.s32 %s61, %s65
      %p67 = scmp.eq.s32.totalorder %s66, 0
      %s69 = sadd.s32 %s68, 1
      %s70 = scalar_select %p67, %s68, %s69
      %p73 = pneg %p67
      %p74 = scmp.eq.s32.totalorder %s38, 1
      %p75 = por %p73, %p74
      %p76 = scmp.ne.s32.totalorder %s68, %s71
      %p77 = scmp.eq.s32.totalorder %s38, 0
      %p78 = por %p76, %p77
      %p79 = scmp.ne.s32.totalorder %s68, %s71
      %p80 = scmp.eq.s32.totalorder %s43, 1
      %p81 = por %p79, %p80
      %p82 = scmp.ne.s32.totalorder %s71, %s72
      %p83 = scmp.eq.s32.totalorder %s43, 0
      %p84 = por %p82, %p83
      %p85 = scmp.ne.s32.totalorder %s71, %s72
      %p86 = scmp.eq.s32.totalorder %s44, 1
      %p87 = por %p85, %p86
      %p89 = scmp.ne.s32.totalorder %s72, %s88
      %p90 = scmp.eq.s32.totalorder %s44, 0
      %p91 = por %p89, %p90
      %s92 = sld [smem:[#allocation4 + %s45]]
      %s93 = sadd.s32 %s92, %s46
      %p94 = scmp.lt.s32.totalorder %s93, 0
      %s95 = scalar_select %p94, %s93, 0
      %s96 = sld [smem:[#allocation4 + %s57]]
      %s97 = sadd.s32 %s96, %s53
      %p98 = scmp.lt.s32.totalorder %s97, 0
      %s99 = scalar_select %p98, %s97, 0
      %s100 = ssub.s32 %s95, %s99
      %p101 = scmp.eq.s32.totalorder %s100, 0
      %s103 = sadd.s32 %s102, 1
      %s104 = scalar_select %p101, %s102, %s103
      %p107 = pneg %p101
      %p108 = scmp.eq.s32.totalorder %s38, 1
      %p109 = por %p107, %p108
      %p110 = scmp.ne.s32.totalorder %s102, %s105
      %p111 = scmp.eq.s32.totalorder %s38, 0
      %p112 = por %p110, %p111
      %p113 = scmp.ne.s32.totalorder %s102, %s105
      %p114 = scmp.eq.s32.totalorder %s43, 1
      %p115 = por %p113, %p114
      %p116 = scmp.ne.s32.totalorder %s105, %s106
      %p117 = scmp.eq.s32.totalorder %s43, 0
      %p118 = por %p116, %p117
      %p119 = scmp.ne.s32.totalorder %s105, %s106
      %p120 = scmp.eq.s32.totalorder %s44, 1
      %p121 = por %p119, %p120
      %p123 = scmp.ne.s32.totalorder %s106, %s122
      %p124 = scmp.eq.s32.totalorder %s44, 0
      %p125 = por %p123, %p124
      %s126 = sld [smem:[#allocation4 + %s45]]
      %s127 = sadd.s32 %s126, %s46
      %p128 = scmp.lt.s32.totalorder %s127, 0
      %s129 = scalar_select %p128, %s127, 0
      %s130 = sld [smem:[#allocation4 + %s57]]
      %s131 = sadd.s32 %s130, %s53
      %p132 = scmp.lt.s32.totalorder %s131, 0
      %s133 = scalar_select %p132, %s131, 0
      %s134 = ssub.s32 %s129, %s133
      %p135 = scmp.eq.s32.totalorder %s134, 0
      %s137 = sadd.s32 %s136, 1
      %s138 = scalar_select %p135, %s136, %s137
      %p141 = pneg %p135
      %p142 = scmp.eq.s32.totalorder %s38, 1
      %p143 = por %p141, %p142
      %p144 = scmp.ne.s32.totalorder %s136, %s139
      %p145 = scmp.eq.s32.totalorder %s38, 0
      %p146 = por %p144, %p145
      %p147 = scmp.ne.s32.totalorder %s136, %s139
      %p148 = scmp.eq.s32.totalorder %s43, 1
      %p149 = por %p147, %p148
      %p150 = scmp.ne.s32.totalorder %s139, %s140
      %p151 = scmp.eq.s32.totalorder %s43, 0
      %p152 = por %p150, %p151
      %p153 = scmp.ne.s32.totalorder %s139, %s140
      %p154 = scmp.eq.s32.totalorder %s44, 1
      %p155 = por %p153, %p154
      %p157 = scmp.ne.s32.totalorder %s140, %s156
      %p158 = scmp.eq.s32.totalorder %s44, 0
      %p159 = por %p157, %p158
      %s160 = sld [smem:[#allocation4 + %s45]]
      %s161 = sadd.s32 %s160, %s46
      %p162 = scmp.lt.s32.totalorder %s161, 0
      %s163 = scalar_select %p162, %s161, 0
      %s164 = sld [smem:[#allocation4 + %s57]]
      %s165 = sadd.s32 %s164, %s53
      %p166 = scmp.lt.s32.totalorder %s165, 0
      %s167 = scalar_select %p166, %s165, 0
      %s168 = ssub.s32 %s163, %s167
      %p169 = scmp.eq.s32.totalorder %s168, 0
      %s171 = sadd.s32 %s170, 1
      %s172 = scalar_select %p169, %s170, %s171
      %p175 = pneg %p169
      %p176 = scmp.eq.s32.totalorder %s38, 1
      %p177 = por %p175, %p176
      %p178 = scmp.ne.s32.totalorder %s170, %s173
      %p179 = scmp.eq.s32.totalorder %s38, 0
      %p180 = por %p178, %p179
      %p181 = scmp.ne.s32.totalorder %s170, %s173
      %p182 = scmp.eq.s32.totalorder %s43, 1
      %p183 = por %p181, %p182
      %p184 = scmp.ne.s32.totalorder %s173, %s174
      %p185 = scmp.eq.s32.totalorder %s43, 0
      %p186 = por %p184, %p185
      %p187 = scmp.ne.s32.totalorder %s173, %s174
      %p188 = scmp.eq.s32.totalorder %s44, 1
      %p189 = por %p187, %p188
      %p191 = scmp.ne.s32.totalorder %s174, %s190
      %p192 = scmp.eq.s32.totalorder %s44, 0
      %p193 = por %p191, %p192
      %s194 = ssub.s32 %s45, %s57
      %p195 = scmp.eq.s32.totalorder %s194, 0
      %s197 = sadd.s32 %s196, 1
      %s198 = scalar_select %p195, %s196, %s197
      %p201 = pneg %p195
      %p202 = scmp.eq.s32.totalorder %s38, 1
      %p203 = por %p201, %p202
      %p204 = scmp.ne.s32.totalorder %s196, %s199
      %p205 = scmp.eq.s32.totalorder %s38, 0
      %p206 = por %p204, %p205
      %p207 = scmp.ne.s32.totalorder %s196, %s199
      %p208 = scmp.eq.s32.totalorder %s43, 1
      %p209 = por %p207, %p208
      %p210 = scmp.ne.s32.totalorder %s199, %s200
      %p211 = scmp.eq.s32.totalorder %s43, 0
      %p212 = por %p210, %p211
      %p213 = scmp.ne.s32.totalorder %s199, %s200
      %p214 = scmp.eq.s32.totalorder %s44, 1
      %p215 = por %p213, %p214
      %p217 = scmp.ne.s32.totalorder %s200, %s216
      %p218 = scmp.eq.s32.totalorder %s44, 0
      %p219 = por %p217, %p218
      %s221 = sadd.s32 %s220, 1
      %p224 = scmp.eq.s32.totalorder %s38, 1
      %p225 = scmp.ne.s32.totalorder %s220, %s222
      %p226 = scmp.eq.s32.totalorder %s38, 0
      %p227 = por %p225, %p226
      %p228 = scmp.ne.s32.totalorder %s220, %s222
      %p229 = scmp.eq.s32.totalorder %s43, 1
      %p230 = por %p228, %p229
      %p231 = scmp.ne.s32.totalorder %s222, %s223
      %p232 = scmp.eq.s32.totalorder %s43, 0
      %p233 = por %p231, %p232
      %p234 = scmp.ne.s32.totalorder %s222, %s223
      %p235 = scmp.eq.s32.totalorder %s44, 1
      %p236 = por %p234, %p235
      %p238 = scmp.ne.s32.totalorder %s223, %s237
      %p239 = scmp.eq.s32.totalorder %s44, 0
      %p240 = por %p238, %p239
      %s242 = sadd.s32 %s241, 1
      %p245 = scmp.eq.s32.totalorder %s38, 1
      %p246 = scmp.ne.s32.totalorder %s241, %s243
      %p247 = scmp.eq.s32.totalorder %s38, 0
      %p248 = por %p246, %p247
      %p249 = scmp.ne.s32.totalorder %s241, %s243
      %p250 = scmp.eq.s32.totalorder %s43, 1
      %p251 = por %p249, %p250
      %p252 = scmp.ne.s32.totalorder %s243, %s244
      %p253 = scmp.eq.s32.totalorder %s43, 0
      %p254 = por %p252, %p253
      %p255 = scmp.ne.s32.totalorder %s243, %s244
      %p256 = scmp.eq.s32.totalorder %s44, 1
      %p257 = por %p255, %p256
      %p259 = scmp.ne.s32.totalorder %s244, %s258
      %p260 = scmp.eq.s32.totalorder %s44, 0
      %p261 = por %p259, %p260
      %s263 = sadd.s32 %s262, 1
      %p266 = scmp.eq.s32.totalorder %s38, 1
      %p267 = scmp.ne.s32.totalorder %s262, %s264
      %p268 = scmp.eq.s32.totalorder %s38, 0
      %p269 = por %p267, %p268
      %p270 = scmp.ne.s32.totalorder %s262, %s264
      %p271 = scmp.eq.s32.totalorder %s43, 1
      %p272 = por %p270, %p271
      %p273 = scmp.ne.s32.totalorder %s264, %s265
      %p274 = scmp.eq.s32.totalorder %s43, 0
      %p275 = por %p273, %p274
      %p276 = scmp.ne.s32.totalorder %s264, %s265
      %p277 = scmp.eq.s32.totalorder %s44, 1
      %p278 = por %p276, %p277
      %p280 = scmp.ne.s32.totalorder %s265, %s279
      %p281 = scmp.eq.s32.totalorder %s44, 0
      %p282 = por %p280, %p281
      %s284 = sadd.s32 %s283, 1
      %p287 = scmp.eq.s32.totalorder %s38, 1
      %p288 = scmp.ne.s32.totalorder %s283, %s285
      %p289 = scmp.eq.s32.totalorder %s38, 0
      %p290 = por %p288, %p289
      %p291 = scmp.ne.s32.totalorder %s283, %s285
      %p292 = scmp.eq.s32.totalorder %s43, 1
      %p293 = por %p291, %p292
      %p294 = scmp.ne.s32.totalorder %s285, %s286
      %p295 = scmp.eq.s32.totalorder %s43, 0
      %p296 = por %p294, %p295
      %p297 = scmp.ne.s32.totalorder %s285, %s286
      %p298 = scmp.eq.s32.totalorder %s44, 1
      %p299 = por %p297, %p298
      %p301 = scmp.ne.s32.totalorder %s286, %s300
      %p302 = scmp.eq.s32.totalorder %s44, 0
      %p303 = por %p301, %p302
      %s305 = sadd.s32 %s304, 1
      %p308 = scmp.eq.s32.totalorder %s38, 1
      %p309 = scmp.ne.s32.totalorder %s304, %s306
      %p310 = scmp.eq.s32.totalorder %s38, 0
      %p311 = por %p309, %p310
      %p312 = scmp.ne.s32.totalorder %s304, %s306
      %p313 = scmp.eq.s32.totalorder %s43, 1
      %p314 = por %p312, %p313
      %p315 = scmp.ne.s32.totalorder %s306, %s307
      %p316 = scmp.eq.s32.totalorder %s43, 0
      %p317 = por %p315, %p316
      %p318 = scmp.ne.s32.totalorder %s306, %s307
      %p319 = scmp.eq.s32.totalorder %s44, 1
      %p320 = por %p318, %p319
      %p322 = scmp.ne.s32.totalorder %s307, %s321
      %p323 = scmp.eq.s32.totalorder %s44, 0
      %p324 = por %p322, %p323
      %s326 = sadd.s32 %s325, 1
      %p329 = scmp.eq.s32.totalorder %s38, 1
      %p330 = scmp.ne.s32.totalorder %s325, %s327
      %p331 = scmp.eq.s32.totalorder %s38, 0
      %p332 = por %p330, %p331
      %p333 = scmp.ne.s32.totalorder %s325, %s327
      %p334 = scmp.eq.s32.totalorder %s43, 1
      %p335 = por %p333, %p334
      %p336 = scmp.ne.s32.totalorder %s327, %s328
      %p337 = scmp.eq.s32.totalorder %s43, 0
      %p338 = por %p336, %p337
      %p339 = scmp.ne.s32.totalorder %s327, %s328
      %p340 = scmp.eq.s32.totalorder %s44, 1
      %p341 = por %p339, %p340
      %p343 = scmp.ne.s32.totalorder %s328, %s342
      %p344 = scmp.eq.s32.totalorder %s44, 0
      %p345 = por %p343, %p344
      %s347 = sadd.s32 %s346, 1
      %p350 = scmp.eq.s32.totalorder %s38, 1
      %p351 = scmp.ne.s32.totalorder %s346, %s348
      %p352 = scmp.eq.s32.totalorder %s38, 0
      %p353 = por %p351, %p352
      %p354 = scmp.ne.s32.totalorder %s346, %s348
      %p355 = scmp.eq.s32.totalorder %s43, 1
      %p356 = por %p354, %p355
      %p357 = scmp.ne.s32.totalorder %s348, %s349
      %p358 = scmp.eq.s32.totalorder %s43, 0
      %p359 = por %p357, %p358
      %p360 = scmp.ne.s32.totalorder %s348, %s349
      %p361 = scmp.eq.s32.totalorder %s44, 1
      %p362 = por %p360, %p361
      %p364 = scmp.ne.s32.totalorder %s349, %s363
      %p365 = scmp.eq.s32.totalorder %s44, 0
      %p366 = por %p364, %p365
      %s367 = ssub.s32 %s45, %s57
      %p368 = scmp.eq.s32.totalorder %s367, 0
      %s370 = sadd.s32 %s369, 1
      %s371 = scalar_select %p368, %s369, %s370
      %p374 = pneg %p368
      %p375 = scmp.eq.s32.totalorder %s38, 1
      %p376 = por %p374, %p375
      %p377 = scmp.ne.s32.totalorder %s369, %s372
      %p378 = scmp.eq.s32.totalorder %s38, 0
      %p379 = por %p377, %p378
      %p380 = scmp.ne.s32.totalorder %s369, %s372
      %p381 = scmp.eq.s32.totalorder %s43, 1
      %p382 = por %p380, %p381
      %p383 = scmp.ne.s32.totalorder %s372, %s373
      %p384 = scmp.eq.s32.totalorder %s43, 0
      %p385 = por %p383, %p384
      %p386 = scmp.ne.s32.totalorder %s372, %s373
      %p387 = scmp.eq.s32.totalorder %s44, 1
      %p388 = por %p386, %p387
      %p390 = scmp.ne.s32.totalorder %s373, %s389
      %p391 = scmp.eq.s32.totalorder %s44, 0
      %p392 = por %p390, %p391
      %p393 = scmp.le.s32.totalorder 1, %s38
      %p394 = scmp.lt.s32.totalorder %s38, 3
      %p395 = pnand %p393, %p394
      %p396 = pneg %p395
      // Predicated region
      $region9: #{tpu_custom_call.1} parent=5 // pred_check
        _
      $region10: #{tpu_custom_call.1} parent=5 // pred_check_branch
        %398 = sbr.rel (%p395) target = $region12
      $region11: #{tpu_custom_call.1} parent=5 // pred_region
        %s399 = ssub.s32 %s38, 1
        // Predicated region
        $region13: #{tpu_custom_call.1} parent=11 // pred_check
          %p400 = pneg %p233
        $region14: #{tpu_custom_call.1} parent=11 // pred_check_branch
          %402 = sbr.rel (%p400) target = $region16
        $region15: #{tpu_custom_call.1} parent=11 // pred_region
          _
        $region16: #{tpu_custom_call.1} parent=11 // pred_fallthru
          _
        // Predicated region
        $region17: #{tpu_custom_call.1} parent=11 // pred_check
          %p403 = pneg %p254
        $region18: #{tpu_custom_call.1} parent=11 // pred_check_branch
          %405 = sbr.rel (%p403) target = $region20
        $region19: #{tpu_custom_call.1} parent=11 // pred_region
          _
        $region20: #{tpu_custom_call.1} parent=11 // pred_fallthru
          _
        // Predicated region
        $region21: #{tpu_custom_call.1} parent=11 // pred_check
          %p406 = pneg %p275
        $region22: #{tpu_custom_call.1} parent=11 // pred_check_branch
          %408 = sbr.rel (%p406) target = $region24
        $region23: #{tpu_custom_call.1} parent=11 // pred_region
          _
        $region24: #{tpu_custom_call.1} parent=11 // pred_fallthru
          _
        // Predicated region
        $region25: #{tpu_custom_call.1} parent=11 // pred_check
          %p409 = pneg %p296
        $region26: #{tpu_custom_call.1} parent=11 // pred_check_branch
          %411 = sbr.rel (%p409) target = $region28
        $region27: #{tpu_custom_call.1} parent=11 // pred_region
          _
        $region28: #{tpu_custom_call.1} parent=11 // pred_fallthru
          _
        // Predicated region
        $region29: #{tpu_custom_call.1} parent=11 // pred_check
          %p412 = pneg %p317
        $region30: #{tpu_custom_call.1} parent=11 // pred_check_branch
          %414 = sbr.rel (%p412) target = $region32
        $region31: #{tpu_custom_call.1} parent=11 // pred_region
          _
        $region32: #{tpu_custom_call.1} parent=11 // pred_fallthru
          _
        // Predicated region
        $region33: #{tpu_custom_call.1} parent=11 // pred_check
          %p415 = pneg %p338
        $region34: #{tpu_custom_call.1} parent=11 // pred_check_branch
          %417 = sbr.rel (%p415) target = $region36
        $region35: #{tpu_custom_call.1} parent=11 // pred_region
          _
        $region36: #{tpu_custom_call.1} parent=11 // pred_fallthru
          _
        // Predicated region
        $region37: #{tpu_custom_call.1} parent=11 // pred_check
          %p418 = pneg %p359
        $region38: #{tpu_custom_call.1} parent=11 // pred_check_branch
          %420 = sbr.rel (%p418) target = $region40
        $region39: #{tpu_custom_call.1} parent=11 // pred_region
          _
        $region40: #{tpu_custom_call.1} parent=11 // pred_fallthru
          _
      $region12: #{tpu_custom_call.1} parent=5 // pred_fallthru
        _
      %p421 = scmp.lt.s32.totalorder %s38, 2
      // Predicated region
      $region41: #{tpu_custom_call.1} parent=5 // pred_check
        %p422 = pneg %p421
      $region42: #{tpu_custom_call.1} parent=5 // pred_check_branch
        %424 = sbr.rel (%p422) target = $region44
      $region43: #{tpu_custom_call.1} parent=5 // pred_region
        // Predicated region
        $region45: #{tpu_custom_call.1} parent=43 // pred_check
          %p425 = pneg %p78
        $region46: #{tpu_custom_call.1} parent=43 // pred_check_branch
          %427 = sbr.rel (%p425) target = $region48
        $region47: #{tpu_custom_call.1} parent=43 // pred_region
          %s428 = sld [smem:[#allocation4 + %s45]]
          %s429 = sadd.s32 %s428, %s46
          %p430 = scmp.lt.s32.totalorder %s429, 0
          %s431 = scalar_select %p430, %s429, 0
          %s432 = smul.u32 16, %s431
          %p433 = scmp.lt.s32.totalorder %s432, 15
          %s434 = scalar_select %p433, %s432, 15
          %s435 = smul.addr %s434, 4
          %s436 = scalar_lea.vmem %s2, %s435
          %s437 = sld [smem:[#allocation4 + %s45]]
          %s438 = sadd.s32 %s437, %s46
          %p439 = scmp.lt.s32.totalorder %s438, 0
          %s440 = scalar_select %p439, %s438, 0
          %s441 = smul.u32 16, %s440
        $region48: #{tpu_custom_call.1} parent=43 // pred_fallthru
          _
        // Predicated region
        $region49: #{tpu_custom_call.1} parent=43 // pred_check
          %p442 = pneg %p112
        $region50: #{tpu_custom_call.1} parent=43 // pred_check_branch
          %444 = sbr.rel (%p442) target = $region52
        $region51: #{tpu_custom_call.1} parent=43 // pred_region
          %s445 = sld [smem:[#allocation4 + %s45]]
          %s446 = sadd.s32 %s445, %s46
          %p447 = scmp.lt.s32.totalorder %s446, 0
          %s448 = scalar_select %p447, %s446, 0
          %s449 = smul.u32 16, %s448
          %p450 = scmp.lt.s32.totalorder %s449, 15
          %s451 = scalar_select %p450, %s449, 15
          %s452 = smul.addr %s451, 4
          %s453 = scalar_lea.vmem %s3, %s452
          %s454 = sld [smem:[#allocation4 + %s45]]
          %s455 = sadd.s32 %s454, %s46
          %p456 = scmp.lt.s32.totalorder %s455, 0
          %s457 = scalar_select %p456, %s455, 0
          %s458 = smul.u32 16, %s457
        $region52: #{tpu_custom_call.1} parent=43 // pred_fallthru
          _
        // Predicated region
        $region53: #{tpu_custom_call.1} parent=43 // pred_check
          %p459 = pneg %p146
        $region54: #{tpu_custom_call.1} parent=43 // pred_check_branch
          %461 = sbr.rel (%p459) target = $region56
        $region55: #{tpu_custom_call.1} parent=43 // pred_region
          %s462 = sld [smem:[#allocation4 + %s45]]
          %s463 = sadd.s32 %s462, %s46
          %p464 = scmp.lt.s32.totalorder %s463, 0
          %s465 = scalar_select %p464, %s463, 0
          %s466 = smul.u32 16, %s465
          %p467 = scmp.lt.s32.totalorder %s466, 15
          %s468 = scalar_select %p467, %s466, 15
          %s469 = smul.addr %s468, 4
          %s470 = scalar_lea.vmem %s4, %s469
          %s471 = sld [smem:[#allocation4 + %s45]]
          %s472 = sadd.s32 %s471, %s46
          %p473 = scmp.lt.s32.totalorder %s472, 0
          %s474 = scalar_select %p473, %s472, 0
          %s475 = smul.u32 16, %s474
        $region56: #{tpu_custom_call.1} parent=43 // pred_fallthru
          _
        // Predicated region
        $region57: #{tpu_custom_call.1} parent=43 // pred_check
          %p476 = pneg %p180
        $region58: #{tpu_custom_call.1} parent=43 // pred_check_branch
          %478 = sbr.rel (%p476) target = $region60
        $region59: #{tpu_custom_call.1} parent=43 // pred_region
          %s479 = sld [smem:[#allocation4 + %s45]]
          %s480 = sadd.s32 %s479, %s46
          %p481 = scmp.lt.s32.totalorder %s480, 0
          %s482 = scalar_select %p481, %s480, 0
          %p483 = scmp.lt.s32.totalorder %s482, 0
          %s484 = scalar_select %p483, %s482, 0
          %s485 = scalar_lea.vmem %s5, %s484
          %s486 = sld [smem:[#allocation4 + %s45]]
          %s487 = sadd.s32 %s486, %s46
          %p488 = scmp.lt.s32.totalorder %s487, 0
          %s489 = scalar_select %p488, %s487, 0
        $region60: #{tpu_custom_call.1} parent=43 // pred_fallthru
          _
        // Predicated region
        $region61: #{tpu_custom_call.1} parent=43 // pred_check
          %p490 = pneg %p206
        $region62: #{tpu_custom_call.1} parent=43 // pred_check_branch
          %492 = sbr.rel (%p490) target = $region64
        $region63: #{tpu_custom_call.1} parent=43 // pred_region
          %p493 = scmp.lt.s32.totalorder %s45, 1
          %s494 = scalar_select %p493, %s45, 1
          %s495 = smul.addr %s494, 8
          %s496 = scalar_lea.vmem %s6, %s495
        $region64: #{tpu_custom_call.1} parent=43 // pred_fallthru
          _
      $region44: #{tpu_custom_call.1} parent=5 // pred_fallthru
        _
      %p497 = scmp.le.s32.totalorder 1, %s38
      %p498 = scmp.lt.s32.totalorder %s38, 3
      %p499 = pnand %p497, %p498
      %p500 = pneg %p499
      // Predicated region
      $region65: #{tpu_custom_call.1} parent=5 // pred_check
        _
      $region66: #{tpu_custom_call.1} parent=5 // pred_check_branch
        %502 = sbr.rel (%p499) target = $region68
      $region67: #{tpu_custom_call.1} parent=5 // pred_region
        %s503 = ssub.s32 %s38, 1
        %s504 = sld [smem:[#allocation4 + %s47]]
        %s505 = sadd.s32 %s504, %s48
        %p506 = scmp.lt.s32.totalorder %s505, 0
        %s507 = scalar_select %p506, %s505, 0
        %s508 = smul.u32 16, %s507
        %p509 = scmp.lt.s32.totalorder %s508, 15
        %s510 = scalar_select %p509, %s508, 15
        %s511 = smul.addr %s510, 4
        %s512 = scalar_lea.vmem %s2, %s511
        %p513 = pneg %p84
        %p514 = pneg %p81
        %s515 = sld [smem:[#allocation4 + %s47]]
        %s516 = sadd.s32 %s515, %s48
        %p517 = scmp.lt.s32.totalorder %s516, 0
        %s518 = scalar_select %p517, %s516, 0
        %s519 = smul.u32 16, %s518
        %p520 = scmp.lt.s32.totalorder %s519, 15
        %s521 = scalar_select %p520, %s519, 15
        %s522 = smul.addr %s521, 4
        %s523 = scalar_lea.vmem %s3, %s522
        %p524 = pneg %p118
        %p525 = pneg %p115
        %s526 = sld [smem:[#allocation4 + %s47]]
        %s527 = sadd.s32 %s526, %s48
        %p528 = scmp.lt.s32.totalorder %s527, 0
        %s529 = scalar_select %p528, %s527, 0
        %s530 = smul.u32 16, %s529
        %p531 = scmp.lt.s32.totalorder %s530, 15
        %s532 = scalar_select %p531, %s530, 15
        %s533 = smul.addr %s532, 4
        %s534 = scalar_lea.vmem %s4, %s533
        %p535 = pneg %p152
        %p536 = pneg %p149
        %s537 = sld [smem:[#allocation4 + %s47]]
        %s538 = sadd.s32 %s537, %s48
        %p539 = scmp.lt.s32.totalorder %s538, 0
        %s540 = scalar_select %p539, %s538, 0
        %p541 = scmp.lt.s32.totalorder %s540, 0
        %s542 = scalar_select %p541, %s540, 0
        %s543 = scalar_lea.vmem %s5, %s542
        %p544 = pneg %p186
        %p545 = pneg %p183
        %p546 = scmp.lt.s32.totalorder %s47, 1
        %s547 = scalar_select %p546, %s47, 1
        %s548 = smul.addr %s547, 8
        %s549 = scalar_lea.vmem %s6, %s548
        %p550 = pneg %p212
        %p551 = pneg %p209
        %p552 = pneg %p233
        %p553 = pneg %p230
        %p554 = pneg %p254
        %p555 = pneg %p251
        %p556 = pneg %p275
        %p557 = pneg %p272
        %p558 = pneg %p296
        %p559 = pneg %p293
        %p560 = pneg %p317
        %p561 = pneg %p314
        %p562 = pneg %p338
        %p563 = pneg %p335
        %p564 = pneg %p359
        %p565 = pneg %p356
        %p566 = pneg %p385
        %p567 = pneg %p382
        %s568 = sand.u32 %s372, 1
        %s569 = scalar_lea.sflag [#allocation8], %s568
        %s570 = sand.u32 %s372, 1
        %s571 = smul.addr %s570, 8
        %s572 = scalar_lea.vmem [#allocation7], %s571
        %s573 = sld [smem:[#allocation4 + %s47]]
        %s574 = sadd.s32 %s573, %s48
        %p575 = scmp.lt.s32.totalorder %s574, 0
        %s576 = scalar_select %p575, %s574, 0
        %s577 = smul.u32 16, %s576
        %p578 = scmp.lt.s32.totalorder %s577, 15
        %s579 = scalar_select %p578, %s577, 15
        %s580 = smul.addr %s579, 4
        %s581 = scalar_lea.vmem %s2, %s580
        %s582 = sld [smem:[#allocation4 + %s47]]
        %s583 = sadd.s32 %s582, %s48
        %p584 = scmp.lt.s32.totalorder %s583, 0
        %s585 = scalar_select %p584, %s583, 0
        %s586 = smul.u32 16, %s585
        %s587 = sld [smem:[#allocation4 + %s47]]
        %s588 = sadd.s32 %s587, %s48
        %p589 = scmp.lt.s32.totalorder %s588, 0
        %s590 = scalar_select %p589, %s588, 0
        %s591 = smul.u32 16, %s590
        %p592 = scmp.lt.s32.totalorder %s591, 15
        %s593 = scalar_select %p592, %s591, 15
        %s594 = smul.addr %s593, 4
        %s595 = scalar_lea.vmem %s3, %s594
        %s596 = sld [smem:[#allocation4 + %s47]]
        %s597 = sadd.s32 %s596, %s48
        %p598 = scmp.lt.s32.totalorder %s597, 0
        %s599 = scalar_select %p598, %s597, 0
        %s600 = smul.u32 16, %s599
        %s601 = sld [smem:[#allocation4 + %s47]]
        %s602 = sadd.s32 %s601, %s48
        %p603 = scmp.lt.s32.totalorder %s602, 0
        %s604 = scalar_select %p603, %s602, 0
        %s605 = smul.u32 16, %s604
        %p606 = scmp.lt.s32.totalorder %s605, 15
        %s607 = scalar_select %p606, %s605, 15
        %s608 = smul.addr %s607, 4
        %s609 = scalar_lea.vmem %s4, %s608
        %s610 = sld [smem:[#allocation4 + %s47]]
        %s611 = sadd.s32 %s610, %s48
        %p612 = scmp.lt.s32.totalorder %s611, 0
        %s613 = scalar_select %p612, %s611, 0
        %s614 = smul.u32 16, %s613
        %s615 = sld [smem:[#allocation4 + %s47]]
        %s616 = sadd.s32 %s615, %s48
        %p617 = scmp.lt.s32.totalorder %s616, 0
        %s618 = scalar_select %p617, %s616, 0
        %p619 = scmp.lt.s32.totalorder %s618, 0
        %s620 = scalar_select %p619, %s618, 0
        %s621 = scalar_lea.vmem %s5, %s620
        %s622 = sld [smem:[#allocation4 + %s47]]
        %s623 = sadd.s32 %s622, %s48
        %p624 = scmp.lt.s32.totalorder %s623, 0
        %s625 = scalar_select %p624, %s623, 0
        %p626 = scmp.lt.s32.totalorder %s47, 1
        %s627 = scalar_select %p626, %s47, 1
        %s628 = smul.addr %s627, 8
        %s629 = scalar_lea.vmem %s6, %s628
        %p631 = scmp.eq.s32.totalorder %s48, 0
        // Predicated region
        $region69: #{tpu_custom_call.1} parent=67 // pred_check
          %p632 = pneg %p631
        $region70: #{tpu_custom_call.1} parent=67 // pred_check_branch
          %634 = sbr.rel (%p632) target = $region72
        $region71: #{tpu_custom_call.1} parent=67 // pred_region
          %vm635 = vcmask 261120
          %636 = vst.msk [vmem:[#allocation2] sm:$0xff] %vm635, 0.0
        $region72: #{tpu_custom_call.1} parent=67 // pred_fallthru
          _
        %s637 = sld [smem:[#allocation5 + %s47]]
        %p638 = scmp.lt.s32.totalorder %s48, %s637
        // Predicated region
        $region73: #{tpu_custom_call.1} parent=67 // pred_check
          %p639 = pneg %p638
        $region74: #{tpu_custom_call.1} parent=67 // pred_check_branch
          %641 = sbr.rel (%p639) target = $region76
        $region75: #{tpu_custom_call.1} parent=67 // pred_region
          %v642 = vld [vmem:[%s581] sm:$0xf]
          %v643 = vld [vmem:[%s581 + $0x4] sm:$0xf]
          %v644 = vld [vmem:[%s581 + $0x8] sm:$0xf]
          %v645 = vld [vmem:[%s581 + $0xc] sm:$0xf]
          %v646 = vld [vmem:[%s581 + $0x10] sm:$0xf]
          %v647 = vld [vmem:[%s581 + $0x14] sm:$0xf]
          %v648 = vld [vmem:[%s581 + $0x18] sm:$0xf]
          %v649 = vld [vmem:[%s581 + $0x1c] sm:$0xf]
          %v650 = vld [vmem:[%s581 + $0x20] sm:$0xf]
          %v651 = vld [vmem:[%s581 + $0x24] sm:$0xf]
          %v652 = vld [vmem:[%s581 + $0x28] sm:$0xf]
          %v653 = vld [vmem:[%s581 + $0x2c] sm:$0xf]
          %v654 = vld [vmem:[%s581 + $0x30] sm:$0xf]
          %v655 = vld [vmem:[%s581 + $0x34] sm:$0xf]
          %v656 = vld [vmem:[%s581 + $0x38] sm:$0xf]
          %v657 = vld [vmem:[%s581 + $0x3c] sm:$0xf]
          %v658 = vld [vmem:[%s595] sm:$0xf]
          %v659 = vld [vmem:[%s595 + $0x4] sm:$0xf]
          %v660 = vld [vmem:[%s595 + $0x8] sm:$0xf]
          %v661 = vld [vmem:[%s595 + $0xc] sm:$0xf]
          %v662 = vld [vmem:[%s595 + $0x10] sm:$0xf]
          %v663 = vld [vmem:[%s595 + $0x14] sm:$0xf]
          %v664 = vld [vmem:[%s595 + $0x18] sm:$0xf]
          %v665 = vld [vmem:[%s595 + $0x1c] sm:$0xf]
          %v666 = vld [vmem:[%s595 + $0x20] sm:$0xf]
          %v667 = vld [vmem:[%s595 + $0x24] sm:$0xf]
          %v668 = vld [vmem:[%s595 + $0x28] sm:$0xf]
          %v669 = vld [vmem:[%s595 + $0x2c] sm:$0xf]
          %v670 = vld [vmem:[%s595 + $0x30] sm:$0xf]
          %v671 = vld [vmem:[%s595 + $0x34] sm:$0xf]
          %v672 = vld [vmem:[%s595 + $0x38] sm:$0xf]
          %v673 = vld [vmem:[%s595 + $0x3c] sm:$0xf]
          %v674 = vld [vmem:[%s7] sm:$0xf]
          %v675 = vld [vmem:[%s7 + $0x4] sm:$0xf]
          %v676 = vld [vmem:[%s7 + $0x8] sm:$0xf]
          %v677 = vld [vmem:[%s7 + $0xc] sm:$0xf]
          %v678 = vld [vmem:[%s8] sm:$0xf]
          %v679 = vld [vmem:[%s8 + $0x4] sm:$0xf]
          %v680 = vld [vmem:[%s8 + $0x8] sm:$0xf]
          %v681 = vld [vmem:[%s8 + $0xc] sm:$0xf]
          %v698 = vunpack.c.l.b16 %v658
          %v699 = vunpack.c.l.b16 %v659
          %v700 = vunpack.c.l.b16 %v660
          %v701 = vunpack.c.l.b16 %v661
          %v702 = vunpack.c.l.b16 %v662
          %v703 = vunpack.c.l.b16 %v663
          %v704 = vunpack.c.l.b16 %v664
          %v705 = vunpack.c.l.b16 %v665
          %v706 = vunpack.c.l.b16 %v666
          %v707 = vunpack.c.l.b16 %v667
          %v708 = vunpack.c.l.b16 %v668
          %v709 = vunpack.c.l.b16 %v669
          %v710 = vunpack.c.l.b16 %v670
          %v711 = vunpack.c.l.b16 %v671
          %v712 = vunpack.c.l.b16 %v672
          %v713 = vunpack.c.l.b16 %v673
          %v714 = vpack.c.b16 %v699, %v698
          %v715 = vpack.c.b16 %v701, %v700
          %v716 = vpack.c.b16 %v703, %v702
          %v717 = vpack.c.b16 %v705, %v704
          %v718 = vpack.c.b16 %v707, %v706
          %v719 = vpack.c.b16 %v709, %v708
          %v720 = vpack.c.b16 %v711, %v710
          %v721 = vpack.c.b16 %v713, %v712
          %v726 = vunpack.c.l.b16 %v678
          %v727 = vunpack.c.l.b16 %v679
          %v728 = vunpack.c.l.b16 %v680
          %v729 = vunpack.c.l.b16 %v681
          %v730 = vpack.c.b16 %v727, %v726
          %v731 = vpack.c.b16 %v729, %v728
          %vm734 = vcmask 261120
          %v736 = vsel %vm734, %v714, 0
          %v739 = vsel %vm734, %v715, 0
          %v742 = vsel %vm734, %v716, 0
          %v745 = vsel %vm734, %v717, 0
          %v748 = vsel %vm734, %v718, 0
          %v751 = vsel %vm734, %v719, 0
          %v754 = vsel %vm734, %v720, 0
          %v757 = vsel %vm734, %v721, 0
          %759 = vmatpush.bf16.msra.mxu0 0
          %760 = vmatpush.bf16.msra.mxu0 0
          %761 = vmatpush.bf16.msra.mxu0 0
          %762 = vmatpush.bf16.msra.mxu0 0
          %763 = vmatpush.bf16.msra.mxu0 0
          %764 = vmatpush.bf16.msra.mxu0 0
          %765 = vmatpush.bf16.msra.mxu0 %v731
          %766 = vmatpush.bf16.msra.mxu0 %v730
          %767 = vmatmul.bf16.gmra.mxu0 %v736
          %v768 = vpop.f32.mrf.mxu0
          %v769 = vadd.f32 0.0, %v768
          %v770 = vpop.f32.mrf.mxu0
          %v771 = vadd.f32 0.0, %v770
          %772 = vmatmul.bf16.gmra.mxu0 %v739
          %v773 = vpop.f32.mrf.mxu0
          %v774 = vadd.f32 0.0, %v773
          %v775 = vpop.f32.mrf.mxu0
          %v776 = vadd.f32 0.0, %v775
          %777 = vmatmul.bf16.gmra.mxu0 %v742
          %v778 = vpop.f32.mrf.mxu0
          %v779 = vadd.f32 0.0, %v778
          %v780 = vpop.f32.mrf.mxu0
          %v781 = vadd.f32 0.0, %v780
          %782 = vmatmul.bf16.gmra.mxu0 %v745
          %v783 = vpop.f32.mrf.mxu0
          %v784 = vadd.f32 0.0, %v783
          %v785 = vpop.f32.mrf.mxu0
          %v786 = vadd.f32 0.0, %v785
          %787 = vmatmul.bf16.gmra.mxu0 %v748
          %v788 = vpop.f32.mrf.mxu0
          %v789 = vadd.f32 0.0, %v788
          %v790 = vpop.f32.mrf.mxu0
          %v791 = vadd.f32 0.0, %v790
          %792 = vmatmul.bf16.gmra.mxu0 %v751
          %v793 = vpop.f32.mrf.mxu0
          %v794 = vadd.f32 0.0, %v793
          %v795 = vpop.f32.mrf.mxu0
          %v796 = vadd.f32 0.0, %v795
          %797 = vmatmul.bf16.gmra.mxu0 %v754
          %v798 = vpop.f32.mrf.mxu0
          %v799 = vadd.f32 0.0, %v798
          %v800 = vpop.f32.mrf.mxu0
          %v801 = vadd.f32 0.0, %v800
          %802 = vmatmul.bf16.gmra.mxu0 %v757
          %v803 = vpop.f32.mrf.mxu0
          %v804 = vadd.f32 0.0, %v803
          %v805 = vpop.f32.mrf.mxu0
          %v806 = vadd.f32 0.0, %v805
          %807 = vdwg.mxu0
          %v824 = vunpack.c.l.b16 %v642
          %v825 = vunpack.c.l.b16 %v643
          %v826 = vunpack.c.l.b16 %v644
          %v827 = vunpack.c.l.b16 %v645
          %v828 = vunpack.c.l.b16 %v646
          %v829 = vunpack.c.l.b16 %v647
          %v830 = vunpack.c.l.b16 %v648
          %v831 = vunpack.c.l.b16 %v649
          %v832 = vunpack.c.l.b16 %v650
          %v833 = vunpack.c.l.b16 %v651
          %v834 = vunpack.c.l.b16 %v652
          %v835 = vunpack.c.l.b16 %v653
          %v836 = vunpack.c.l.b16 %v654
          %v837 = vunpack.c.l.b16 %v655
          %v838 = vunpack.c.l.b16 %v656
          %v839 = vunpack.c.l.b16 %v657
          %v840 = vpack.c.b16 %v825, %v824
          %v841 = vpack.c.b16 %v827, %v826
          %v842 = vpack.c.b16 %v829, %v828
          %v843 = vpack.c.b16 %v831, %v830
          %v844 = vpack.c.b16 %v833, %v832
          %v845 = vpack.c.b16 %v835, %v834
          %v846 = vpack.c.b16 %v837, %v836
          %v847 = vpack.c.b16 %v839, %v838
          %v852 = vunpack.c.l.b16 %v674
          %v853 = vunpack.c.l.b16 %v675
          %v854 = vunpack.c.l.b16 %v676
          %v855 = vunpack.c.l.b16 %v677
          %v856 = vpack.c.b16 %v853, %v852
          %v857 = vpack.c.b16 %v855, %v854
          %v861 = vsel %vm734, %v840, 0
          %v864 = vsel %vm734, %v841, 0
          %v867 = vsel %vm734, %v842, 0
          %v870 = vsel %vm734, %v843, 0
          %v873 = vsel %vm734, %v844, 0
          %v876 = vsel %vm734, %v845, 0
          %v879 = vsel %vm734, %v846, 0
          %v882 = vsel %vm734, %v847, 0
          %884 = vmatpush.bf16.msra.mxu0 0
          %885 = vmatpush.bf16.msra.mxu0 0
          %886 = vmatpush.bf16.msra.mxu0 0
          %887 = vmatpush.bf16.msra.mxu0 0
          %888 = vmatpush.bf16.msra.mxu0 0
          %889 = vmatpush.bf16.msra.mxu0 0
          %890 = vmatpush.bf16.msra.mxu0 %v857
          %891 = vmatpush.bf16.msra.mxu0 %v856
          %892 = vmatmul.bf16.gmra.mxu0 %v861
          %v893 = vpop.f32.mrf.mxu0
          %v894 = vadd.f32 %v769, %v893
          %v895 = vpop.f32.mrf.mxu0
          %v896 = vadd.f32 %v771, %v895
          %897 = vmatmul.bf16.gmra.mxu0 %v864
          %v898 = vpop.f32.mrf.mxu0
          %v899 = vadd.f32 %v774, %v898
          %v900 = vpop.f32.mrf.mxu0
          %v901 = vadd.f32 %v776, %v900
          %902 = vmatmul.bf16.gmra.mxu0 %v867
          %v903 = vpop.f32.mrf.mxu0
          %v904 = vadd.f32 %v779, %v903
          %v905 = vpop.f32.mrf.mxu0
          %v906 = vadd.f32 %v781, %v905
          %907 = vmatmul.bf16.gmra.mxu0 %v870
          %v908 = vpop.f32.mrf.mxu0
          %v909 = vadd.f32 %v784, %v908
          %v910 = vpop.f32.mrf.mxu0
          %v911 = vadd.f32 %v786, %v910
          %912 = vmatmul.bf16.gmra.mxu0 %v873
          %v913 = vpop.f32.mrf.mxu0
          %v914 = vadd.f32 %v789, %v913
          %v915 = vpop.f32.mrf.mxu0
          %v916 = vadd.f32 %v791, %v915
          %917 = vmatmul.bf16.gmra.mxu0 %v876
          %v918 = vpop.f32.mrf.mxu0
          %v919 = vadd.f32 %v794, %v918
          %v920 = vpop.f32.mrf.mxu0
          %v921 = vadd.f32 %v796, %v920
          %922 = vmatmul.bf16.gmra.mxu0 %v879
          %v923 = vpop.f32.mrf.mxu0
          %v924 = vadd.f32 %v799, %v923
          %v925 = vpop.f32.mrf.mxu0
          %v926 = vadd.f32 %v801, %v925
          %927 = vmatmul.bf16.gmra.mxu0 %v882
          %v928 = vpop.f32.mrf.mxu0
          %v929 = vadd.f32 %v804, %v928
          %v930 = vpop.f32.mrf.mxu0
          %v931 = vadd.f32 %v806, %v930
          %932 = vdwg.mxu0
          %v933 = vld [vmem:[%s609] sm:$0xf]
          %v934 = vld [vmem:[%s609 + $0x4] sm:$0xf]
          %v935 = vld [vmem:[%s609 + $0x8] sm:$0xf]
          %v936 = vld [vmem:[%s609 + $0xc] sm:$0xf]
          %v937 = vld [vmem:[%s609 + $0x10] sm:$0xf]
          %v938 = vld [vmem:[%s609 + $0x14] sm:$0xf]
          %v939 = vld [vmem:[%s609 + $0x18] sm:$0xf]
          %v940 = vld [vmem:[%s609 + $0x1c] sm:$0xf]
          %v941 = vld [vmem:[%s609 + $0x20] sm:$0xf]
          %v942 = vld [vmem:[%s609 + $0x24] sm:$0xf]
          %v943 = vld [vmem:[%s609 + $0x28] sm:$0xf]
          %v944 = vld [vmem:[%s609 + $0x2c] sm:$0xf]
          %v945 = vld [vmem:[%s609 + $0x30] sm:$0xf]
          %v946 = vld [vmem:[%s609 + $0x34] sm:$0xf]
          %v947 = vld [vmem:[%s609 + $0x38] sm:$0xf]
          %v948 = vld [vmem:[%s609 + $0x3c] sm:$0xf]
          %v949 = vunpack.c.l.bf16 %v933
          %v950 = vunpack.c.l.bf16 %v934
          %v951 = vunpack.c.l.bf16 %v935
          %v952 = vunpack.c.l.bf16 %v936
          %v953 = vunpack.c.l.bf16 %v937
          %v954 = vunpack.c.l.bf16 %v938
          %v955 = vunpack.c.l.bf16 %v939
          %v956 = vunpack.c.l.bf16 %v940
          %v957 = vunpack.c.l.bf16 %v941
          %v958 = vunpack.c.l.bf16 %v942
          %v959 = vunpack.c.l.bf16 %v943
          %v960 = vunpack.c.l.bf16 %v944
          %v961 = vunpack.c.l.bf16 %v945
          %v962 = vunpack.c.l.bf16 %v946
          %v963 = vunpack.c.l.bf16 %v947
          %v964 = vunpack.c.l.bf16 %v948
          %v965 = vadd.f32 %v894, %v949
          %v966 = vadd.f32 %v896, %v950
          %v967 = vadd.f32 %v899, %v951
          %v968 = vadd.f32 %v901, %v952
          %v969 = vadd.f32 %v904, %v953
          %v970 = vadd.f32 %v906, %v954
          %v971 = vadd.f32 %v909, %v955
          %v972 = vadd.f32 %v911, %v956
          %v973 = vadd.f32 %v914, %v957
          %v974 = vadd.f32 %v916, %v958
          %v975 = vadd.f32 %v919, %v959
          %v976 = vadd.f32 %v921, %v960
          %v977 = vadd.f32 %v924, %v961
          %v978 = vadd.f32 %v926, %v962
          %v979 = vadd.f32 %v929, %v963
          %v980 = vadd.f32 %v931, %v964
          %v981 = vmax.f32 %v965, 0.0
          %v982 = vmax.f32 %v966, 0.0
          %v983 = vmax.f32 %v967, 0.0
          %v984 = vmax.f32 %v968, 0.0
          %v985 = vmax.f32 %v969, 0.0
          %v986 = vmax.f32 %v970, 0.0
          %v987 = vmax.f32 %v971, 0.0
          %v988 = vmax.f32 %v972, 0.0
          %v989 = vmax.f32 %v973, 0.0
          %v990 = vmax.f32 %v974, 0.0
          %v991 = vmax.f32 %v975, 0.0
          %v992 = vmax.f32 %v976, 0.0
          %v993 = vmax.f32 %v977, 0.0
          %v994 = vmax.f32 %v978, 0.0
          %v995 = vmax.f32 %v979, 0.0
          %v996 = vmax.f32 %v980, 0.0
          %v997 = vld [vmem:[%s9] sm:$0x1]
          %v999 = vperm.slane %v997, 0
          %v1001 = vmul.f32 %v981, %v999
          %v1002 = vmul.f32 %v982, %v999
          %v1003 = vmul.f32 %v983, %v999
          %v1004 = vmul.f32 %v984, %v999
          %v1005 = vmul.f32 %v985, %v999
          %v1006 = vmul.f32 %v986, %v999
          %v1007 = vmul.f32 %v987, %v999
          %v1008 = vmul.f32 %v988, %v999
          %v1009 = vmul.f32 %v989, %v999
          %v1010 = vmul.f32 %v990, %v999
          %v1011 = vmul.f32 %v991, %v999
          %v1012 = vmul.f32 %v992, %v999
          %v1013 = vmul.f32 %v993, %v999
          %v1014 = vmul.f32 %v994, %v999
          %v1015 = vmul.f32 %v995, %v999
          %v1016 = vmul.f32 %v996, %v999
          %v1017 = vsel %vm734, %v1001, 0.0
          %1018 = vadd.xlane.f32.xlu0 %v1017
          %v1019 = vpop.xlane.xlu0 %1018
          %v1020 = vsel %vm734, %v1002, 0.0
          %1021 = vadd.xlane.f32.xlu0 %v1020
          %v1022 = vpop.xlane.xlu0 %1021
          %v1023 = vsel %vm734, %v1003, 0.0
          %1024 = vadd.xlane.f32.xlu0 %v1023
          %v1025 = vpop.xlane.xlu0 %1024
          %v1026 = vsel %vm734, %v1004, 0.0
          %1027 = vadd.xlane.f32.xlu0 %v1026
          %v1028 = vpop.xlane.xlu0 %1027
          %v1029 = vsel %vm734, %v1005, 0.0
          %1030 = vadd.xlane.f32.xlu0 %v1029
          %v1031 = vpop.xlane.xlu0 %1030
          %v1032 = vsel %vm734, %v1006, 0.0
          %1033 = vadd.xlane.f32.xlu0 %v1032
          %v1034 = vpop.xlane.xlu0 %1033
          %v1035 = vsel %vm734, %v1007, 0.0
          %1036 = vadd.xlane.f32.xlu0 %v1035
          %v1037 = vpop.xlane.xlu0 %1036
          %v1038 = vsel %vm734, %v1008, 0.0
          %1039 = vadd.xlane.f32.xlu0 %v1038
          %v1040 = vpop.xlane.xlu0 %1039
          %v1041 = vsel %vm734, %v1009, 0.0
          %1042 = vadd.xlane.f32.xlu0 %v1041
          %v1043 = vpop.xlane.xlu0 %1042
          %v1044 = vsel %vm734, %v1010, 0.0
          %1045 = vadd.xlane.f32.xlu0 %v1044
          %v1046 = vpop.xlane.xlu0 %1045
          %v1047 = vsel %vm734, %v1011, 0.0
          %1048 = vadd.xlane.f32.xlu0 %v1047
          %v1049 = vpop.xlane.xlu0 %1048
          %v1050 = vsel %vm734, %v1012, 0.0
          %1051 = vadd.xlane.f32.xlu0 %v1050
          %v1052 = vpop.xlane.xlu0 %1051
          %v1053 = vsel %vm734, %v1013, 0.0
          %1054 = vadd.xlane.f32.xlu0 %v1053
          %v1055 = vpop.xlane.xlu0 %1054
          %v1056 = vsel %vm734, %v1014, 0.0
          %1057 = vadd.xlane.f32.xlu0 %v1056
          %v1058 = vpop.xlane.xlu0 %1057
          %v1059 = vsel %vm734, %v1015, 0.0
          %1060 = vadd.xlane.f32.xlu0 %v1059
          %v1061 = vpop.xlane.xlu0 %1060
          %v1062 = vsel %vm734, %v1016, 0.0
          %1063 = vadd.xlane.f32.xlu0 %v1062
          %v1064 = vpop.xlane.xlu0 %1063
          %v1065 = vld [vmem:[#allocation6] sm:$0x1]
          %v1067 = vperm.slane %v1065, 0
          %v1069 = vadd.f32 %v1019, %v1067
          %v1070 = vadd.f32 %v1022, %v1067
          %v1071 = vadd.f32 %v1025, %v1067
          %v1072 = vadd.f32 %v1028, %v1067
          %v1073 = vadd.f32 %v1031, %v1067
          %v1074 = vadd.f32 %v1034, %v1067
          %v1075 = vadd.f32 %v1037, %v1067
          %v1076 = vadd.f32 %v1040, %v1067
          %v1077 = vadd.f32 %v1043, %v1067
          %v1078 = vadd.f32 %v1046, %v1067
          %v1079 = vadd.f32 %v1049, %v1067
          %v1080 = vadd.f32 %v1052, %v1067
          %v1081 = vadd.f32 %v1055, %v1067
          %v1082 = vadd.f32 %v1058, %v1067
          %v1083 = vadd.f32 %v1061, %v1067
          %v1084 = vadd.f32 %v1064, %v1067
          %v1085 = vxor.u32 %v1069, 2147483648
          %v1086 = vxor.u32 %v1070, 2147483648
          %v1087 = vxor.u32 %v1071, 2147483648
          %v1088 = vxor.u32 %v1072, 2147483648
          %v1089 = vxor.u32 %v1073, 2147483648
          %v1090 = vxor.u32 %v1074, 2147483648
          %v1091 = vxor.u32 %v1075, 2147483648
          %v1092 = vxor.u32 %v1076, 2147483648
          %v1093 = vxor.u32 %v1077, 2147483648
          %v1094 = vxor.u32 %v1078, 2147483648
          %v1095 = vxor.u32 %v1079, 2147483648
          %v1096 = vxor.u32 %v1080, 2147483648
          %v1097 = vxor.u32 %v1081, 2147483648
          %v1098 = vxor.u32 %v1082, 2147483648
          %v1099 = vxor.u32 %v1083, 2147483648
          %v1100 = vxor.u32 %v1084, 2147483648
          %v1101 = vmul.f32 %v1085, 1.442695
          %v1102 = vpow.pop %v1101
          %v1103 = vmul.f32 %v1086, 1.442695
          %v1104 = vpow.pop %v1103
          %v1105 = vmul.f32 %v1087, 1.442695
          %v1106 = vpow.pop %v1105
          %v1107 = vmul.f32 %v1088, 1.442695
          %v1108 = vpow.pop %v1107
          %v1109 = vmul.f32 %v1089, 1.442695
          %v1110 = vpow.pop %v1109
          %v1111 = vmul.f32 %v1090, 1.442695
          %v1112 = vpow.pop %v1111
          %v1113 = vmul.f32 %v1091, 1.442695
          %v1114 = vpow.pop %v1113
          %v1115 = vmul.f32 %v1092, 1.442695
          %v1116 = vpow.pop %v1115
          %v1117 = vmul.f32 %v1093, 1.442695
          %v1118 = vpow.pop %v1117
          %v1119 = vmul.f32 %v1094, 1.442695
          %v1120 = vpow.pop %v1119
          %v1121 = vmul.f32 %v1095, 1.442695
          %v1122 = vpow.pop %v1121
          %v1123 = vmul.f32 %v1096, 1.442695
          %v1124 = vpow.pop %v1123
          %v1125 = vmul.f32 %v1097, 1.442695
          %v1126 = vpow.pop %v1125
          %v1127 = vmul.f32 %v1098, 1.442695
          %v1128 = vpow.pop %v1127
          %v1129 = vmul.f32 %v1099, 1.442695
          %v1130 = vpow.pop %v1129
          %v1131 = vmul.f32 %v1100, 1.442695
          %v1132 = vpow.pop %v1131
          %v1133 = vadd.f32 %v1102, 1.0
          %v1134 = vadd.f32 %v1104, 1.0
          %v1135 = vadd.f32 %v1106, 1.0
          %v1136 = vadd.f32 %v1108, 1.0
          %v1137 = vadd.f32 %v1110, 1.0
          %v1138 = vadd.f32 %v1112, 1.0
          %v1139 = vadd.f32 %v1114, 1.0
          %v1140 = vadd.f32 %v1116, 1.0
          %v1141 = vadd.f32 %v1118, 1.0
          %v1142 = vadd.f32 %v1120, 1.0
          %v1143 = vadd.f32 %v1122, 1.0
          %v1144 = vadd.f32 %v1124, 1.0
          %v1145 = vadd.f32 %v1126, 1.0
          %v1146 = vadd.f32 %v1128, 1.0
          %v1147 = vadd.f32 %v1130, 1.0
          %v1148 = vadd.f32 %v1132, 1.0
          %v1149 = vrcp.pop %v1133
          %v1150 = vmul.f32 %v1133, %v1149
          %v1151 = vsub.f32 1.0, %v1150
          %v1152 = vmul.f32 %v1149, %v1151
          %v1153 = vadd.f32 %v1149, %v1152
          %vm1154 = vweird.f32 %v1133
          %vm1155 = vweird.f32 %v1149
          %vm1156 = vmor %vm1154, %vm1155
          %v1157 = vsel %vm1156, %v1149, %v1153
          %v1158 = vand.u32 2147483647, %v1133
          %vm1159 = vcmp.eq.f32.partialorder %v1158, 8.507059e+37
          %v1160 = vand.u32 %v1133, 2147483648
          %v1161 = vor.u32 1.1754944e-38, %v1160
          %v1162 = vsel %vm1159, %v1161, %v1157
          %v1163 = vmul.f32 1.0, %v1162
          %v1164 = vrcp.pop %v1134
          %v1165 = vmul.f32 %v1134, %v1164
          %v1166 = vsub.f32 1.0, %v1165
          %v1167 = vmul.f32 %v1164, %v1166
          %v1168 = vadd.f32 %v1164, %v1167
          %vm1169 = vweird.f32 %v1134
          %vm1170 = vweird.f32 %v1164
          %vm1171 = vmor %vm1169, %vm1170
          %v1172 = vsel %vm1171, %v1164, %v1168
          %v1173 = vand.u32 2147483647, %v1134
          %vm1174 = vcmp.eq.f32.partialorder %v1173, 8.507059e+37
          %v1175 = vand.u32 %v1134, 2147483648
          %v1176 = vor.u32 1.1754944e-38, %v1175
          %v1177 = vsel %vm1174, %v1176, %v1172
          %v1178 = vmul.f32 1.0, %v1177
          %v1179 = vrcp.pop %v1135
          %v1180 = vmul.f32 %v1135, %v1179
          %v1181 = vsub.f32 1.0, %v1180
          %v1182 = vmul.f32 %v1179, %v1181
          %v1183 = vadd.f32 %v1179, %v1182
          %vm1184 = vweird.f32 %v1135
          %vm1185 = vweird.f32 %v1179
          %vm1186 = vmor %vm1184, %vm1185
          %v1187 = vsel %vm1186, %v1179, %v1183
          %v1188 = vand.u32 2147483647, %v1135
          %vm1189 = vcmp.eq.f32.partialorder %v1188, 8.507059e+37
          %v1190 = vand.u32 %v1135, 2147483648
          %v1191 = vor.u32 1.1754944e-38, %v1190
          %v1192 = vsel %vm1189, %v1191, %v1187
          %v1193 = vmul.f32 1.0, %v1192
          %v1194 = vrcp.pop %v1136
          %v1195 = vmul.f32 %v1136, %v1194
          %v1196 = vsub.f32 1.0, %v1195
          %v1197 = vmul.f32 %v1194, %v1196
          %v1198 = vadd.f32 %v1194, %v1197
          %vm1199 = vweird.f32 %v1136
          %vm1200 = vweird.f32 %v1194
          %vm1201 = vmor %vm1199, %vm1200
          %v1202 = vsel %vm1201, %v1194, %v1198
          %v1203 = vand.u32 2147483647, %v1136
          %vm1204 = vcmp.eq.f32.partialorder %v1203, 8.507059e+37
          %v1205 = vand.u32 %v1136, 2147483648
          %v1206 = vor.u32 1.1754944e-38, %v1205
          %v1207 = vsel %vm1204, %v1206, %v1202
          %v1208 = vmul.f32 1.0, %v1207
          %v1209 = vrcp.pop %v1137
          %v1210 = vmul.f32 %v1137, %v1209
          %v1211 = vsub.f32 1.0, %v1210
          %v1212 = vmul.f32 %v1209, %v1211
          %v1213 = vadd.f32 %v1209, %v1212
          %vm1214 = vweird.f32 %v1137
          %vm1215 = vweird.f32 %v1209
          %vm1216 = vmor %vm1214, %vm1215
          %v1217 = vsel %vm1216, %v1209, %v1213
          %v1218 = vand.u32 2147483647, %v1137
          %vm1219 = vcmp.eq.f32.partialorder %v1218, 8.507059e+37
          %v1220 = vand.u32 %v1137, 2147483648
          %v1221 = vor.u32 1.1754944e-38, %v1220
          %v1222 = vsel %vm1219, %v1221, %v1217
          %v1223 = vmul.f32 1.0, %v1222
          %v1224 = vrcp.pop %v1138
          %v1225 = vmul.f32 %v1138, %v1224
          %v1226 = vsub.f32 1.0, %v1225
          %v1227 = vmul.f32 %v1224, %v1226
          %v1228 = vadd.f32 %v1224, %v1227
          %vm1229 = vweird.f32 %v1138
          %vm1230 = vweird.f32 %v1224
          %vm1231 = vmor %vm1229, %vm1230
          %v1232 = vsel %vm1231, %v1224, %v1228
          %v1233 = vand.u32 2147483647, %v1138
          %vm1234 = vcmp.eq.f32.partialorder %v1233, 8.507059e+37
          %v1235 = vand.u32 %v1138, 2147483648
          %v1236 = vor.u32 1.1754944e-38, %v1235
          %v1237 = vsel %vm1234, %v1236, %v1232
          %v1238 = vmul.f32 1.0, %v1237
          %v1239 = vrcp.pop %v1139
          %v1240 = vmul.f32 %v1139, %v1239
          %v1241 = vsub.f32 1.0, %v1240
          %v1242 = vmul.f32 %v1239, %v1241
          %v1243 = vadd.f32 %v1239, %v1242
          %vm1244 = vweird.f32 %v1139
          %vm1245 = vweird.f32 %v1239
          %vm1246 = vmor %vm1244, %vm1245
          %v1247 = vsel %vm1246, %v1239, %v1243
          %v1248 = vand.u32 2147483647, %v1139
          %vm1249 = vcmp.eq.f32.partialorder %v1248, 8.507059e+37
          %v1250 = vand.u32 %v1139, 2147483648
          %v1251 = vor.u32 1.1754944e-38, %v1250
          %v1252 = vsel %vm1249, %v1251, %v1247
          %v1253 = vmul.f32 1.0, %v1252
          %v1254 = vrcp.pop %v1140
          %v1255 = vmul.f32 %v1140, %v1254
          %v1256 = vsub.f32 1.0, %v1255
          %v1257 = vmul.f32 %v1254, %v1256
          %v1258 = vadd.f32 %v1254, %v1257
          %vm1259 = vweird.f32 %v1140
          %vm1260 = vweird.f32 %v1254
          %vm1261 = vmor %vm1259, %vm1260
          %v1262 = vsel %vm1261, %v1254, %v1258
          %v1263 = vand.u32 2147483647, %v1140
          %vm1264 = vcmp.eq.f32.partialorder %v1263, 8.507059e+37
          %v1265 = vand.u32 %v1140, 2147483648
          %v1266 = vor.u32 1.1754944e-38, %v1265
          %v1267 = vsel %vm1264, %v1266, %v1262
          %v1268 = vmul.f32 1.0, %v1267
          %v1269 = vrcp.pop %v1141
          %v1270 = vmul.f32 %v1141, %v1269
          %v1271 = vsub.f32 1.0, %v1270
          %v1272 = vmul.f32 %v1269, %v1271
          %v1273 = vadd.f32 %v1269, %v1272
          %vm1274 = vweird.f32 %v1141
          %vm1275 = vweird.f32 %v1269
          %vm1276 = vmor %vm1274, %vm1275
          %v1277 = vsel %vm1276, %v1269, %v1273
          %v1278 = vand.u32 2147483647, %v1141
          %vm1279 = vcmp.eq.f32.partialorder %v1278, 8.507059e+37
          %v1280 = vand.u32 %v1141, 2147483648
          %v1281 = vor.u32 1.1754944e-38, %v1280
          %v1282 = vsel %vm1279, %v1281, %v1277
          %v1283 = vmul.f32 1.0, %v1282
          %v1284 = vrcp.pop %v1142
          %v1285 = vmul.f32 %v1142, %v1284
          %v1286 = vsub.f32 1.0, %v1285
          %v1287 = vmul.f32 %v1284, %v1286
          %v1288 = vadd.f32 %v1284, %v1287
          %vm1289 = vweird.f32 %v1142
          %vm1290 = vweird.f32 %v1284
          %vm1291 = vmor %vm1289, %vm1290
          %v1292 = vsel %vm1291, %v1284, %v1288
          %v1293 = vand.u32 2147483647, %v1142
          %vm1294 = vcmp.eq.f32.partialorder %v1293, 8.507059e+37
          %v1295 = vand.u32 %v1142, 2147483648
          %v1296 = vor.u32 1.1754944e-38, %v1295
          %v1297 = vsel %vm1294, %v1296, %v1292
          %v1298 = vmul.f32 1.0, %v1297
          %v1299 = vrcp.pop %v1143
          %v1300 = vmul.f32 %v1143, %v1299
          %v1301 = vsub.f32 1.0, %v1300
          %v1302 = vmul.f32 %v1299, %v1301
          %v1303 = vadd.f32 %v1299, %v1302
          %vm1304 = vweird.f32 %v1143
          %vm1305 = vweird.f32 %v1299
          %vm1306 = vmor %vm1304, %vm1305
          %v1307 = vsel %vm1306, %v1299, %v1303
          %v1308 = vand.u32 2147483647, %v1143
          %vm1309 = vcmp.eq.f32.partialorder %v1308, 8.507059e+37
          %v1310 = vand.u32 %v1143, 2147483648
          %v1311 = vor.u32 1.1754944e-38, %v1310
          %v1312 = vsel %vm1309, %v1311, %v1307
          %v1313 = vmul.f32 1.0, %v1312
          %v1314 = vrcp.pop %v1144
          %v1315 = vmul.f32 %v1144, %v1314
          %v1316 = vsub.f32 1.0, %v1315
          %v1317 = vmul.f32 %v1314, %v1316
          %v1318 = vadd.f32 %v1314, %v1317
          %vm1319 = vweird.f32 %v1144
          %vm1320 = vweird.f32 %v1314
          %vm1321 = vmor %vm1319, %vm1320
          %v1322 = vsel %vm1321, %v1314, %v1318
          %v1323 = vand.u32 2147483647, %v1144
          %vm1324 = vcmp.eq.f32.partialorder %v1323, 8.507059e+37
          %v1325 = vand.u32 %v1144, 2147483648
          %v1326 = vor.u32 1.1754944e-38, %v1325
          %v1327 = vsel %vm1324, %v1326, %v1322
          %v1328 = vmul.f32 1.0, %v1327
          %v1329 = vrcp.pop %v1145
          %v1330 = vmul.f32 %v1145, %v1329
          %v1331 = vsub.f32 1.0, %v1330
          %v1332 = vmul.f32 %v1329, %v1331
          %v1333 = vadd.f32 %v1329, %v1332
          %vm1334 = vweird.f32 %v1145
          %vm1335 = vweird.f32 %v1329
          %vm1336 = vmor %vm1334, %vm1335
          %v1337 = vsel %vm1336, %v1329, %v1333
          %v1338 = vand.u32 2147483647, %v1145
          %vm1339 = vcmp.eq.f32.partialorder %v1338, 8.507059e+37
          %v1340 = vand.u32 %v1145, 2147483648
          %v1341 = vor.u32 1.1754944e-38, %v1340
          %v1342 = vsel %vm1339, %v1341, %v1337
          %v1343 = vmul.f32 1.0, %v1342
          %v1344 = vrcp.pop %v1146
          %v1345 = vmul.f32 %v1146, %v1344
          %v1346 = vsub.f32 1.0, %v1345
          %v1347 = vmul.f32 %v1344, %v1346
          %v1348 = vadd.f32 %v1344, %v1347
          %vm1349 = vweird.f32 %v1146
          %vm1350 = vweird.f32 %v1344
          %vm1351 = vmor %vm1349, %vm1350
          %v1352 = vsel %vm1351, %v1344, %v1348
          %v1353 = vand.u32 2147483647, %v1146
          %vm1354 = vcmp.eq.f32.partialorder %v1353, 8.507059e+37
          %v1355 = vand.u32 %v1146, 2147483648
          %v1356 = vor.u32 1.1754944e-38, %v1355
          %v1357 = vsel %vm1354, %v1356, %v1352
          %v1358 = vmul.f32 1.0, %v1357
          %v1359 = vrcp.pop %v1147
          %v1360 = vmul.f32 %v1147, %v1359
          %v1361 = vsub.f32 1.0, %v1360
          %v1362 = vmul.f32 %v1359, %v1361
          %v1363 = vadd.f32 %v1359, %v1362
          %vm1364 = vweird.f32 %v1147
          %vm1365 = vweird.f32 %v1359
          %vm1366 = vmor %vm1364, %vm1365
          %v1367 = vsel %vm1366, %v1359, %v1363
          %v1368 = vand.u32 2147483647, %v1147
          %vm1369 = vcmp.eq.f32.partialorder %v1368, 8.507059e+37
          %v1370 = vand.u32 %v1147, 2147483648
          %v1371 = vor.u32 1.1754944e-38, %v1370
          %v1372 = vsel %vm1369, %v1371, %v1367
          %v1373 = vmul.f32 1.0, %v1372
          %v1374 = vrcp.pop %v1148
          %v1375 = vmul.f32 %v1148, %v1374
          %v1376 = vsub.f32 1.0, %v1375
          %v1377 = vmul.f32 %v1374, %v1376
          %v1378 = vadd.f32 %v1374, %v1377
          %vm1379 = vweird.f32 %v1148
          %vm1380 = vweird.f32 %v1374
          %vm1381 = vmor %vm1379, %vm1380
          %v1382 = vsel %vm1381, %v1374, %v1378
          %v1383 = vand.u32 2147483647, %v1148
          %vm1384 = vcmp.eq.f32.partialorder %v1383, 8.507059e+37
          %v1385 = vand.u32 %v1148, 2147483648
          %v1386 = vor.u32 1.1754944e-38, %v1385
          %v1387 = vsel %vm1384, %v1386, %v1382
          %v1388 = vmul.f32 1.0, %v1387
          %v1389 = vunpack.c.l.bf16 %v642
          %v1390 = vunpack.c.l.bf16 %v643
          %v1391 = vunpack.c.l.bf16 %v644
          %v1392 = vunpack.c.l.bf16 %v645
          %v1393 = vunpack.c.l.bf16 %v646
          %v1394 = vunpack.c.l.bf16 %v647
          %v1395 = vunpack.c.l.bf16 %v648
          %v1396 = vunpack.c.l.bf16 %v649
          %v1397 = vunpack.c.l.bf16 %v650
          %v1398 = vunpack.c.l.bf16 %v651
          %v1399 = vunpack.c.l.bf16 %v652
          %v1400 = vunpack.c.l.bf16 %v653
          %v1401 = vunpack.c.l.bf16 %v654
          %v1402 = vunpack.c.l.bf16 %v655
          %v1403 = vunpack.c.l.bf16 %v656
          %v1404 = vunpack.c.l.bf16 %v657
          %v1405 = vunpack.c.l.bf16 %v658
          %v1406 = vunpack.c.l.bf16 %v659
          %v1407 = vunpack.c.l.bf16 %v660
          %v1408 = vunpack.c.l.bf16 %v661
          %v1409 = vunpack.c.l.bf16 %v662
          %v1410 = vunpack.c.l.bf16 %v663
          %v1411 = vunpack.c.l.bf16 %v664
          %v1412 = vunpack.c.l.bf16 %v665
          %v1413 = vunpack.c.l.bf16 %v666
          %v1414 = vunpack.c.l.bf16 %v667
          %v1415 = vunpack.c.l.bf16 %v668
          %v1416 = vunpack.c.l.bf16 %v669
          %v1417 = vunpack.c.l.bf16 %v670
          %v1418 = vunpack.c.l.bf16 %v671
          %v1419 = vunpack.c.l.bf16 %v672
          %v1420 = vunpack.c.l.bf16 %v673
          %v1421 = vadd.f32 %v1389, %v1405
          %v1422 = vadd.f32 %v1390, %v1406
          %v1423 = vadd.f32 %v1391, %v1407
          %v1424 = vadd.f32 %v1392, %v1408
          %v1425 = vadd.f32 %v1393, %v1409
          %v1426 = vadd.f32 %v1394, %v1410
          %v1427 = vadd.f32 %v1395, %v1411
          %v1428 = vadd.f32 %v1396, %v1412
          %v1429 = vadd.f32 %v1397, %v1413
          %v1430 = vadd.f32 %v1398, %v1414
          %v1431 = vadd.f32 %v1399, %v1415
          %v1432 = vadd.f32 %v1400, %v1416
          %v1433 = vadd.f32 %v1401, %v1417
          %v1434 = vadd.f32 %v1402, %v1418
          %v1435 = vadd.f32 %v1403, %v1419
          %v1436 = vadd.f32 %v1404, %v1420
          %1438 = vset.pattern.permute.xlu0 0
          %1439 = vperm.xlu0 %1438, %v1163
          %v1440 = vpop.permute.xlu0 %1439
          %1443 = vset.pattern.permute.xlu0 0
          %1444 = vperm.xlu0 %1443, %v1178
          %v1445 = vpop.permute.xlu0 %1444
          %1448 = vset.pattern.permute.xlu0 0
          %1449 = vperm.xlu0 %1448, %v1193
          %v1450 = vpop.permute.xlu0 %1449
          %1453 = vset.pattern.permute.xlu0 0
          %1454 = vperm.xlu0 %1453, %v1208
          %v1455 = vpop.permute.xlu0 %1454
          %1458 = vset.pattern.permute.xlu0 0
          %1459 = vperm.xlu0 %1458, %v1223
          %v1460 = vpop.permute.xlu0 %1459
          %1463 = vset.pattern.permute.xlu0 0
          %1464 = vperm.xlu0 %1463, %v1238
          %v1465 = vpop.permute.xlu0 %1464
          %1468 = vset.pattern.permute.xlu0 0
          %1469 = vperm.xlu0 %1468, %v1253
          %v1470 = vpop.permute.xlu0 %1469
          %1473 = vset.pattern.permute.xlu0 0
          %1474 = vperm.xlu0 %1473, %v1268
          %v1475 = vpop.permute.xlu0 %1474
          %1478 = vset.pattern.permute.xlu0 0
          %1479 = vperm.xlu0 %1478, %v1283
          %v1480 = vpop.permute.xlu0 %1479
          %1483 = vset.pattern.permute.xlu0 0
          %1484 = vperm.xlu0 %1483, %v1298
          %v1485 = vpop.permute.xlu0 %1484
          %1488 = vset.pattern.permute.xlu0 0
          %1489 = vperm.xlu0 %1488, %v1313
          %v1490 = vpop.permute.xlu0 %1489
          %1493 = vset.pattern.permute.xlu0 0
          %1494 = vperm.xlu0 %1493, %v1328
          %v1495 = vpop.permute.xlu0 %1494
          %1498 = vset.pattern.permute.xlu0 0
          %1499 = vperm.xlu0 %1498, %v1343
          %v1500 = vpop.permute.xlu0 %1499
          %1503 = vset.pattern.permute.xlu0 0
          %1504 = vperm.xlu0 %1503, %v1358
          %v1505 = vpop.permute.xlu0 %1504
          %1508 = vset.pattern.permute.xlu0 0
          %1509 = vperm.xlu0 %1508, %v1373
          %v1510 = vpop.permute.xlu0 %1509
          %1513 = vset.pattern.permute.xlu0 0
          %1514 = vperm.xlu0 %1513, %v1388
          %v1515 = vpop.permute.xlu0 %1514
          %v1517 = vmul.f32 %v1440, %v1421
          %v1518 = vmul.f32 %v1445, %v1422
          %v1519 = vmul.f32 %v1450, %v1423
          %v1520 = vmul.f32 %v1455, %v1424
          %v1521 = vmul.f32 %v1460, %v1425
          %v1522 = vmul.f32 %v1465, %v1426
          %v1523 = vmul.f32 %v1470, %v1427
          %v1524 = vmul.f32 %v1475, %v1428
          %v1525 = vmul.f32 %v1480, %v1429
          %v1526 = vmul.f32 %v1485, %v1430
          %v1527 = vmul.f32 %v1490, %v1431
          %v1528 = vmul.f32 %v1495, %v1432
          %v1529 = vmul.f32 %v1500, %v1433
          %v1530 = vmul.f32 %v1505, %v1434
          %v1531 = vmul.f32 %v1510, %v1435
          %v1532 = vmul.f32 %v1515, %v1436
          %v1533 = vpack.c.bf16 %v1518, %v1517
          %v1534 = vpack.c.bf16 %v1520, %v1519
          %v1535 = vpack.c.bf16 %v1522, %v1521
          %v1536 = vpack.c.bf16 %v1524, %v1523
          %v1537 = vpack.c.bf16 %v1526, %v1525
          %v1538 = vpack.c.bf16 %v1528, %v1527
          %v1539 = vpack.c.bf16 %v1530, %v1529
          %v1540 = vpack.c.bf16 %v1532, %v1531
          %v1541 = vlaneseq
          %v1542 = vshrl.u32 %v1541, 7
          %v1543 = vld [vmem:[%s621] sm:$0x1]
          %s1544 = smul.u32 %s47, 8
          %v1545 = vstv %s1544
          %v1546 = vsub.s32 %v1543, %v1545
          %v1547 = vperm.slane %v1546, 0
          %vm1548 = vcmp.eq.s32.totalorder %v1542, %v1547
          %v1549 = vsel %vm1548, 1, 0
          %v1550 = vcvt.s32.f32 %v1549
          %v1551 = vpack.c.bf16 %v1550, %v1550
          %v1552 = vld [vmem:[#allocation2] sm:$0xff]
          %1553 = vmatpush.bf16.msra.mxu0 %v1540
          %1554 = vmatpush.bf16.msra.mxu0 %v1539
          %1555 = vmatpush.bf16.msra.mxu0 %v1538
          %1556 = vmatpush.bf16.msra.mxu0 %v1537
          %1557 = vmatpush.bf16.msra.mxu0 %v1536
          %1558 = vmatpush.bf16.msra.mxu0 %v1535
          %1559 = vmatpush.bf16.msra.mxu0 %v1534
          %1560 = vmatpush.bf16.msra.mxu0 %v1533
          %1561 = vmatmul.bf16.gmra.mxu0 %v1551
          %v1562 = vpop.f32.mrf.mxu0
          %v1563 = vadd.f32 0.0, %v1562
          %v1564 = vpop.f32.mrf.mxu0
          %1565 = vdwg.mxu0
          %v1566 = vadd.f32 %v1552, %v1563
          %1567 = vst.msk [vmem:[#allocation2] sm:$0xff] %vm734, %v1566
        $region76: #{tpu_custom_call.1} parent=67 // pred_fallthru
          _
        // Predicated region
        $region77: #{tpu_custom_call.1} parent=67 // pred_check
          %p1568 = pneg %p631
        $region78: #{tpu_custom_call.1} parent=67 // pred_check_branch
          %1570 = sbr.rel (%p1568) target = $region80
        $region79: #{tpu_custom_call.1} parent=67 // pred_region
          %v1571 = vld [vmem:[#allocation2] sm:$0xff]
          %v1572 = vpack.c.bf16 %v1571, %v1571
          %v1573 = vld [vmem:[%s11] sm:$0xf]
          %v1574 = vld [vmem:[%s11 + $0x4] sm:$0xf]
          %v1575 = vld [vmem:[%s11 + $0x8] sm:$0xf]
          %v1576 = vld [vmem:[%s11 + $0xc] sm:$0xf]
          %v1581 = vunpack.c.l.b16 %v1573
          %v1582 = vunpack.c.l.b16 %v1574
          %v1583 = vunpack.c.l.b16 %v1575
          %v1584 = vunpack.c.l.b16 %v1576
          %v1585 = vpack.c.b16 %v1582, %v1581
          %v1586 = vpack.c.b16 %v1584, %v1583
          %vm1589 = vcmask 261120
          %v1591 = vsel %vm1589, %v1572, 0
          %1593 = vmatpush.bf16.msra.mxu0 0
          %1594 = vmatpush.bf16.msra.mxu0 0
          %1595 = vmatpush.bf16.msra.mxu0 0
          %1596 = vmatpush.bf16.msra.mxu0 0
          %1597 = vmatpush.bf16.msra.mxu0 0
          %1598 = vmatpush.bf16.msra.mxu0 0
          %1599 = vmatpush.bf16.msra.mxu0 %v1586
          %1600 = vmatpush.bf16.msra.mxu0 %v1585
          %1601 = vmatmul.bf16.gmra.mxu0 %v1591
          %v1602 = vpop.f32.mrf.mxu0
          %v1603 = vadd.f32 0.0, %v1602
          %v1604 = vpop.f32.mrf.mxu0
          %1605 = vdwg.mxu0
          %v1606 = vmax.f32 %v1603, 0.0
          %v1607 = vld [vmem:[%s629] sm:$0xff]
          %v1608 = vpack.c.bf16 %v1606, %v1606
          %v1609 = vpack.c.bf16 %v1607, %v1607
          %v1610 = vld [vmem:[%s12] sm:$0xf]
          %v1611 = vld [vmem:[%s12 + $0x4] sm:$0xf]
          %v1612 = vld [vmem:[%s12 + $0x8] sm:$0xf]
          %v1613 = vld [vmem:[%s12 + $0xc] sm:$0xf]
          %v1614 = vld [vmem:[%s13] sm:$0x1]
          %v1616 = vperm.slane %v1614, 0
          %v1622 = vunpack.c.l.b16 %v1610
          %v1623 = vunpack.c.l.b16 %v1611
          %v1624 = vunpack.c.l.b16 %v1612
          %v1625 = vunpack.c.l.b16 %v1613
          %v1626 = vpack.c.b16 %v1623, %v1622
          %v1627 = vpack.c.b16 %v1625, %v1624
          %v1631 = vsel %vm1589, %v1608, 0
          %1633 = vmatpush.bf16.msra.mxu0 0
          %1634 = vmatpush.bf16.msra.mxu0 0
          %1635 = vmatpush.bf16.msra.mxu0 0
          %1636 = vmatpush.bf16.msra.mxu0 0
          %1637 = vmatpush.bf16.msra.mxu0 0
          %1638 = vmatpush.bf16.msra.mxu0 0
          %1639 = vmatpush.bf16.msra.mxu0 %v1627
          %1640 = vmatpush.bf16.msra.mxu0 %v1626
          %1641 = vmatmul.bf16.gmra.mxu0 %v1631
          %v1642 = vpop.f32.mrf.mxu0
          %v1643 = vadd.f32 %v1616, %v1642
          %v1644 = vpop.f32.mrf.mxu0
          %1645 = vdwg.mxu0
          %s1646 = scalar_lea.vmem %s12, 48
          %v1647 = vld [vmem:[%s1646] sm:$0xf]
          %v1648 = vld [vmem:[%s1646 + $0x4] sm:$0xf]
          %v1649 = vld [vmem:[%s1646 + $0x8] sm:$0xf]
          %v1650 = vld [vmem:[%s1646 + $0xc] sm:$0xf]
          %s1651 = scalar_lea.vmem %s13, 3
          %v1652 = vld [vmem:[%s1651] sm:$0x1]
          %v1654 = vperm.slane %v1652, 0
          %v1660 = vunpack.c.l.b16 %v1647
          %v1661 = vunpack.c.l.b16 %v1648
          %v1662 = vunpack.c.l.b16 %v1649
          %v1663 = vunpack.c.l.b16 %v1650
          %v1664 = vpack.c.b16 %v1661, %v1660
          %v1665 = vpack.c.b16 %v1663, %v1662
          %v1669 = vsel %vm1589, %v1609, 0
          %1671 = vmatpush.bf16.msra.mxu0 0
          %1672 = vmatpush.bf16.msra.mxu0 0
          %1673 = vmatpush.bf16.msra.mxu0 0
          %1674 = vmatpush.bf16.msra.mxu0 0
          %1675 = vmatpush.bf16.msra.mxu0 0
          %1676 = vmatpush.bf16.msra.mxu0 0
          %1677 = vmatpush.bf16.msra.mxu0 %v1665
          %1678 = vmatpush.bf16.msra.mxu0 %v1664
          %1679 = vmatmul.bf16.gmra.mxu0 %v1669
          %v1680 = vpop.f32.mrf.mxu0
          %v1681 = vadd.f32 %v1654, %v1680
          %v1682 = vpop.f32.mrf.mxu0
          %1683 = vdwg.mxu0
          %v1684 = vadd.f32 %v1643, %v1681
          %v1685 = vxor.u32 %v1684, 2147483648
          %v1686 = vmul.f32 %v1685, 1.442695
          %v1687 = vpow.pop %v1686
          %v1688 = vadd.f32 %v1687, 1.0
          %v1689 = vrcp.pop %v1688
          %v1690 = vmul.f32 %v1688, %v1689
          %v1691 = vsub.f32 1.0, %v1690
          %v1692 = vmul.f32 %v1689, %v1691
          %v1693 = vadd.f32 %v1689, %v1692
          %vm1694 = vweird.f32 %v1688
          %vm1695 = vweird.f32 %v1689
          %vm1696 = vmor %vm1694, %vm1695
          %v1697 = vsel %vm1696, %v1689, %v1693
          %v1698 = vand.u32 2147483647, %v1688
          %vm1699 = vcmp.eq.f32.partialorder %v1698, 8.507059e+37
          %v1700 = vand.u32 %v1688, 2147483648
          %v1701 = vor.u32 1.1754944e-38, %v1700
          %v1702 = vsel %vm1699, %v1701, %v1697
          %v1703 = vmul.f32 1.0, %v1702
          %s1704 = scalar_lea.vmem %s12, 16
          %v1705 = vld [vmem:[%s1704] sm:$0xf]
          %v1706 = vld [vmem:[%s1704 + $0x4] sm:$0xf]
          %v1707 = vld [vmem:[%s1704 + $0x8] sm:$0xf]
          %v1708 = vld [vmem:[%s1704 + $0xc] sm:$0xf]
          %s1709 = scalar_lea.vmem %s13, 1
          %v1710 = vld [vmem:[%s1709] sm:$0x1]
          %v1712 = vperm.slane %v1710, 0
          %v1718 = vunpack.c.l.b16 %v1705
          %v1719 = vunpack.c.l.b16 %v1706
          %v1720 = vunpack.c.l.b16 %v1707
          %v1721 = vunpack.c.l.b16 %v1708
          %v1722 = vpack.c.b16 %v1719, %v1718
          %v1723 = vpack.c.b16 %v1721, %v1720
          %1726 = vmatpush.bf16.msra.mxu0 0
          %1727 = vmatpush.bf16.msra.mxu0 0
          %1728 = vmatpush.bf16.msra.mxu0 0
          %1729 = vmatpush.bf16.msra.mxu0 0
          %1730 = vmatpush.bf16.msra.mxu0 0
          %1731 = vmatpush.bf16.msra.mxu0 0
          %1732 = vmatpush.bf16.msra.mxu0 %v1723
          %1733 = vmatpush.bf16.msra.mxu0 %v1722
          %1734 = vmatmul.bf16.gmra.mxu0 %v1631
          %v1735 = vpop.f32.mrf.mxu0
          %v1736 = vadd.f32 %v1712, %v1735
          %v1737 = vpop.f32.mrf.mxu0
          %1738 = vdwg.mxu0
          %s1739 = scalar_lea.vmem %s12, 64
          %v1740 = vld [vmem:[%s1739] sm:$0xf]
          %v1741 = vld [vmem:[%s1739 + $0x4] sm:$0xf]
          %v1742 = vld [vmem:[%s1739 + $0x8] sm:$0xf]
          %v1743 = vld [vmem:[%s1739 + $0xc] sm:$0xf]
          %s1744 = scalar_lea.vmem %s13, 4
          %v1745 = vld [vmem:[%s1744] sm:$0x1]
          %v1747 = vperm.slane %v1745, 0
          %v1753 = vunpack.c.l.b16 %v1740
          %v1754 = vunpack.c.l.b16 %v1741
          %v1755 = vunpack.c.l.b16 %v1742
          %v1756 = vunpack.c.l.b16 %v1743
          %v1757 = vpack.c.b16 %v1754, %v1753
          %v1758 = vpack.c.b16 %v1756, %v1755
          %1761 = vmatpush.bf16.msra.mxu0 0
          %1762 = vmatpush.bf16.msra.mxu0 0
          %1763 = vmatpush.bf16.msra.mxu0 0
          %1764 = vmatpush.bf16.msra.mxu0 0
          %1765 = vmatpush.bf16.msra.mxu0 0
          %1766 = vmatpush.bf16.msra.mxu0 0
          %1767 = vmatpush.bf16.msra.mxu0 %v1758
          %1768 = vmatpush.bf16.msra.mxu0 %v1757
          %1769 = vmatmul.bf16.gmra.mxu0 %v1669
          %v1770 = vpop.f32.mrf.mxu0
          %v1771 = vadd.f32 %v1747, %v1770
          %v1772 = vpop.f32.mrf.mxu0
          %1773 = vdwg.mxu0
          %v1774 = vadd.f32 %v1736, %v1771
          %v1775 = vxor.u32 %v1774, 2147483648
          %v1776 = vmul.f32 %v1775, 1.442695
          %v1777 = vpow.pop %v1776
          %v1778 = vadd.f32 %v1777, 1.0
          %v1779 = vrcp.pop %v1778
          %v1780 = vmul.f32 %v1778, %v1779
          %v1781 = vsub.f32 1.0, %v1780
          %v1782 = vmul.f32 %v1779, %v1781
          %v1783 = vadd.f32 %v1779, %v1782
          %vm1784 = vweird.f32 %v1778
          %vm1785 = vweird.f32 %v1779
          %vm1786 = vmor %vm1784, %vm1785
          %v1787 = vsel %vm1786, %v1779, %v1783
          %v1788 = vand.u32 2147483647, %v1778
          %vm1789 = vcmp.eq.f32.partialorder %v1788, 8.507059e+37
          %v1790 = vand.u32 %v1778, 2147483648
          %v1791 = vor.u32 1.1754944e-38, %v1790
          %v1792 = vsel %vm1789, %v1791, %v1787
          %v1793 = vmul.f32 1.0, %v1792
          %s1794 = scalar_lea.vmem %s12, 32
          %v1795 = vld [vmem:[%s1794] sm:$0xf]
          %v1796 = vld [vmem:[%s1794 + $0x4] sm:$0xf]
          %v1797 = vld [vmem:[%s1794 + $0x8] sm:$0xf]
          %v1798 = vld [vmem:[%s1794 + $0xc] sm:$0xf]
          %s1799 = scalar_lea.vmem %s13, 2
          %v1800 = vld [vmem:[%s1799] sm:$0x1]
          %v1802 = vperm.slane %v1800, 0
          %v1808 = vunpack.c.l.b16 %v1795
          %v1809 = vunpack.c.l.b16 %v1796
          %v1810 = vunpack.c.l.b16 %v1797
          %v1811 = vunpack.c.l.b16 %v1798
          %v1812 = vpack.c.b16 %v1809, %v1808
          %v1813 = vpack.c.b16 %v1811, %v1810
          %1816 = vmatpush.bf16.msra.mxu0 0
          %1817 = vmatpush.bf16.msra.mxu0 0
          %1818 = vmatpush.bf16.msra.mxu0 0
          %1819 = vmatpush.bf16.msra.mxu0 0
          %1820 = vmatpush.bf16.msra.mxu0 0
          %1821 = vmatpush.bf16.msra.mxu0 0
          %1822 = vmatpush.bf16.msra.mxu0 %v1813
          %1823 = vmatpush.bf16.msra.mxu0 %v1812
          %1824 = vmatmul.bf16.gmra.mxu0 %v1631
          %v1825 = vpop.f32.mrf.mxu0
          %v1826 = vadd.f32 %v1802, %v1825
          %v1827 = vpop.f32.mrf.mxu0
          %1828 = vdwg.mxu0
          %s1829 = scalar_lea.vmem %s12, 80
          %v1830 = vld [vmem:[%s1829] sm:$0xf]
          %v1831 = vld [vmem:[%s1829 + $0x4] sm:$0xf]
          %v1832 = vld [vmem:[%s1829 + $0x8] sm:$0xf]
          %v1833 = vld [vmem:[%s1829 + $0xc] sm:$0xf]
          %s1834 = scalar_lea.vmem %s13, 5
          %v1835 = vld [vmem:[%s1834] sm:$0x1]
          %v1837 = vperm.slane %v1835, 0
          %v1843 = vunpack.c.l.b16 %v1830
          %v1844 = vunpack.c.l.b16 %v1831
          %v1845 = vunpack.c.l.b16 %v1832
          %v1846 = vunpack.c.l.b16 %v1833
          %v1847 = vpack.c.b16 %v1844, %v1843
          %v1848 = vpack.c.b16 %v1846, %v1845
          %1851 = vmatpush.bf16.msra.mxu0 0
          %1852 = vmatpush.bf16.msra.mxu0 0
          %1853 = vmatpush.bf16.msra.mxu0 0
          %1854 = vmatpush.bf16.msra.mxu0 0
          %1855 = vmatpush.bf16.msra.mxu0 0
          %1856 = vmatpush.bf16.msra.mxu0 0
          %1857 = vmatpush.bf16.msra.mxu0 %v1848
          %1858 = vmatpush.bf16.msra.mxu0 %v1847
          %1859 = vmatmul.bf16.gmra.mxu0 %v1669
          %v1860 = vpop.f32.mrf.mxu0
          %v1861 = vadd.f32 %v1837, %v1860
          %v1862 = vpop.f32.mrf.mxu0
          %1863 = vdwg.mxu0
          %v1864 = vmul.f32 %v1703, %v1861
          %v1865 = vadd.f32 %v1826, %v1864
          %v1866 = vtanh.pop %v1865
          %v1867 = vsub.f32 1.0, %v1793
          %v1868 = vmul.f32 %v1867, %v1866
          %v1869 = vmul.f32 %v1793, %v1607
          %v1870 = vadd.f32 %v1868, %v1869
          %1871 = vst.msk [vmem:[%s572] sm:$0xff] %vm1589, %v1870
        $region80: #{tpu_custom_call.1} parent=67 // pred_fallthru
          _
        %s1872 = sand.u32 %s372, 1
        %s1873 = scalar_lea.sflag [#allocation8], %s1872
        %s1874 = sand.u32 %s372, 1
        %s1875 = smul.addr %s1874, 8
        %s1876 = scalar_lea.vmem [#allocation7], %s1875
        // Predicated region
        $region81: #{tpu_custom_call.1} parent=67 // pred_check
          %p1877 = pneg %p382
        $region82: #{tpu_custom_call.1} parent=67 // pred_check_branch
          %1879 = sbr.rel (%p1877) target = $region84
        $region83: #{tpu_custom_call.1} parent=67 // pred_region
          %1881 = vsyncadd %s1873, 0
          %s1882 = smul.addr %s47, 8
          %s1883 = scalar_lea.hbm %s14, %s1882
          %s1885 = sshll.u32 %s1876, 4
          %s1886 = int_to_ptr.vmem [resolvable:$true] %s1885
          %s1887 = sshll.u32 %s1883, 4
          %s1888 = int_to_ptr.hbm [resolvable:$true] %s1887
          %1890 = dma.vmem_to_hbm [thread:$0]  %s1886, 128, %s1888, %s1873
        $region84: #{tpu_custom_call.1} parent=67 // pred_fallthru
          _
      $region68: #{tpu_custom_call.1} parent=5 // pred_fallthru
        _
      %p1891 = scmp.le.s32.totalorder 2, %s38
      // Predicated region
      $region85: #{tpu_custom_call.1} parent=5 // pred_check
        %p1892 = pneg %p1891
      $region86: #{tpu_custom_call.1} parent=5 // pred_check_branch
        %1894 = sbr.rel (%p1892) target = $region88
      $region87: #{tpu_custom_call.1} parent=5 // pred_region
        %s1895 = ssub.s32 %s38, 2
        // Predicated region
        $region89: #{tpu_custom_call.1} parent=87 // pred_check
          %p1896 = pneg %p388
        $region90: #{tpu_custom_call.1} parent=87 // pred_check_branch
          %1898 = sbr.rel (%p1896) target = $region92
        $region91: #{tpu_custom_call.1} parent=87 // pred_region
          %s1899 = sand.u32 %s373, 1
          %s1900 = scalar_lea.sflag [#allocation8], %s1899
          %s1901 = sand.u32 %s373, 1
          %s1902 = smul.addr %s1901, 8
          %s1903 = scalar_lea.vmem [#allocation7], %s1902
          %1905 = dma.done %s1900, 128
        $region92: #{tpu_custom_call.1} parent=87 // pred_fallthru
          _
      $region88: #{tpu_custom_call.1} parent=5 // pred_fallthru
        _
    $region6: #{tpu_custom_call.1} parent=1 // loop_footer
      %s42 = sadd.s32 1, %s38
    $region7: #{tpu_custom_call.1} parent=1 // loop_footer_branch
      %37 = sbr.rel target = $region3
    $region8: #{tpu_custom_call.1} parent=1 // loop_exit
      _
    %1906 = vsyncpa [#allocation8], 1
    %s1907 = scalar_lea.sflag [#allocation8], 1
    %1908 = vsyncpa %s1907, 1

</llo_original>
